<compile_context>
chip_gen: v7x
topology: tpu7x:2x2x1
jax: 0.10.0
libtpu: 0.0.40
codegen_flags: <defaults>
</compile_context>

<pallas_src>
import jax
import jax.numpy as jnp
from jax.experimental import pallas as pl
from jax.experimental.pallas import tpu as pltpu  # noqa: F401  (kept for TPU-specific extensions)


# ---------------------------------------------------------------------------
# Fused Pallas kernel: all LSTM layers + last-valid gather + FC in one call.
# ---------------------------------------------------------------------------
def make_lstm_kernel(num_layers, hidden_size, seq_len):
    H, T = hidden_size, seq_len

    def kernel(*refs):
        # refs = [x, lengths, (w_ih, w_hh, bias) * num_layers, w_fc, b_fc, out]
        x_ref, len_ref = refs[0], refs[1]
        layer_refs = refs[2:2 + 3 * num_layers]
        wfc_ref = refs[2 + 3 * num_layers]
        bfc_ref = refs[3 + 3 * num_layers]
        out_ref = refs[4 + 3 * num_layers]

        B = x_ref.shape[0]
        x = x_ref[...]                                  # (B, T, D) f32
        lens = len_ref[...]                             # (B, 1)   int32
        last_h = jnp.zeros((B, H), jnp.float32)

        # Time-major flattened layer input, rows ordered [t0:b0..bB-1, t1:..., ...].
        inp_flat = jnp.concatenate([x[:, t, :] for t in range(T)], axis=0)  # (T*B, D)

        for l in range(num_layers):
            wih = layer_refs[3 * l][...]                # (Din, 4H) bf16
            whh = layer_refs[3 * l + 1][...]            # (H,   4H) bf16
            bias = layer_refs[3 * l + 2][...]           # (1,   4H) f32 (b_ih + b_hh)

            # ---- Hoisted input projection: one big bf16 MXU matmul, f32 accum ----
            xg = (jnp.dot(inp_flat.astype(jnp.bfloat16), wih,
                          preferred_element_type=jnp.float32)
                  + bias).reshape(T, B, 4 * H)          # (T, B, 4H) f32 gate slab

            # ---- Sequential recurrence: only h @ W_hh per step on the crit path ----
            h = jnp.zeros((B, H), jnp.float32)
            c = jnp.zeros((B, H), jnp.float32)
            hs = []
            # Static fully-unrolled loop (T small). Padded timesteps are computed
            # and discarded by the mask below, which matches packed-sequence
            # semantics exactly (state at t < len never depends on padded inputs).
            for t in range(T):
                gates = xg[t] + jnp.dot(h.astype(jnp.bfloat16), whh,
                                        preferred_element_type=jnp.float32)  # (B, 4H)
                # PyTorch gate order: i, f, g, o.
                i_g = jax.nn.sigmoid(gates[:, 0 * H:1 * H])
                f_g = jax.nn.sigmoid(gates[:, 1 * H:2 * H])
                g_g = jnp.tanh(gates[:, 2 * H:3 * H])
                o_g = jax.nn.sigmoid(gates[:, 3 * H:4 * H])
                c = f_g * c + i_g * g_g
                h = o_g * jnp.tanh(c)
                if l + 1 < num_layers:
                    hs.append(h)                         # feeds the next layer
                else:
                    # Online "last valid timestep" gather (idx = lengths - 1).
                    last_h = jnp.where(lens == (t + 1), h, last_h)

            if l + 1 < num_layers:
                inp_flat = jnp.concatenate(hs, axis=0)   # (T*B, H) time-major

        # ---- Fused FC head ----
        out_ref[...] = (jnp.dot(last_h.astype(jnp.bfloat16), wfc_ref[...],
                                preferred_element_type=jnp.float32)
                        + bfc_ref[...])

    return kernel


# ---------------------------------------------------------------------------
# Wrapper
# ---------------------------------------------------------------------------
def lstm_forward(params, x, lengths):
    """x: (B, T, input_size) batch_first. lengths: (B,) ints in [1, T]."""
    B, T, _ = x.shape
    H = params["hidden_size"]
    O = params["b_fc"].shape[-1]
    num_layers = len(params["layers"])

    # Pad the batch to a full sublane group (>=8 rows); padded rows are dropped.
    B_pad = max(8, ((B + 7) // 8) * 8)
    pad = B_pad - B
    if pad:
        x = jnp.pad(x, ((0, pad), (0, 0), (0, 0)))
        lengths = jnp.pad(lengths, (0, pad), constant_values=1)

    lens_col = lengths.astype(jnp.int32).reshape(B_pad, 1)

    args = [x.astype(jnp.float32), lens_col]
    for layer in params["layers"]:
        args += [layer["w_ih_t"], layer["w_hh_t"], layer["bias"]]
    args += [params["w_fc_t"], params["b_fc"]]

    # Single invocation (no grid): all operands fit comfortably in VMEM at these
    # sizes, so every array is resident for the whole fused forward pass.
    out = pl.pallas_call(
        make_lstm_kernel(num_layers, H, T),
        out_shape=jax.ShapeDtypeStruct((B_pad, O), jnp.float32),
    )(*args)
    return out[:B]


# ---------------------------------------------------------------------------
# Parameter init (matches PyTorch nn.LSTM / nn.Linear shapes; deterministic).
# Matmul weights stored pre-transposed and in bf16; biases fused + kept f32.
# ---------------------------------------------------------------------------
def init_params(key, input_size, hidden_size, num_layers, output_size):
    bound = 1.0 / jnp.sqrt(jnp.float32(hidden_size))
    layers = []
    for l in range(num_layers):
        in_sz = input_size if l == 0 else hidden_size
        key, k1, k2, k3, k4 = jax.random.split(key, 5)
        w_ih = jax.random.uniform(k1, (4 * hidden_size, in_sz), minval=-bound, maxval=bound)
        w_hh = jax.random.uniform(k2, (4 * hidden_size, hidden_size), minval=-bound, maxval=bound)
        b_ih = jax.random.uniform(k3, (4 * hidden_size,), minval=-bound, maxval=bound)
        b_hh = jax.random.uniform(k4, (4 * hidden_size,), minval=-bound, maxval=bound)
        layers.append(dict(
            w_ih_t=w_ih.T.astype(jnp.bfloat16),                   # (in, 4H)
            w_hh_t=w_hh.T.astype(jnp.bfloat16),                   # (H, 4H)
            bias=(b_ih + b_hh)[None, :].astype(jnp.float32),      # (1, 4H)
        ))
    key, k5, k6 = jax.random.split(key, 3)
    w_fc = jax.random.uniform(k5, (output_size, hidden_size), minval=-bound, maxval=bound)
    b_fc = jax.random.uniform(k6, (output_size,), minval=-bound, maxval=bound)
    return dict(hidden_size=hidden_size,
                layers=layers,
                w_fc_t=w_fc.T.astype(jnp.bfloat16),               # (H, O)
                b_fc=b_fc[None, :].astype(jnp.float32))           # (1, O)


if __name__ == "__main__":
    # TODO(synk): pack_padded_sequence/pad_packed_sequence have no Pallas
    # equivalent; padded timesteps are computed and masked out by the online
    # last-valid gather, which is mathematically identical for this module.
    input_size, hidden_size, num_layers, output_size = 16, 32, 2, 8
    B, T = 4, 8

    key = jax.random.PRNGKey(0)
    key, kx, kp = jax.random.split(key, 3)
    x = jax.random.normal(kx, (B, T, input_size), dtype=jnp.float32)
    lengths = jnp.array([8, 5, 3, 1], dtype=jnp.int32)

    params = init_params(kp, input_size, hidden_size, num_layers, output_size)

    out = lstm_forward(params, x, lengths)
    out = jax.block_until_ready(out)
    assert out.shape == (B, output_size)
    assert out.dtype == jnp.float32
    print("KERNEL_OK")
</pallas_src>

<mosaic_0001>
module attributes {stable_mosaic.version = 11 : i64} {
  func.func @kernel(%arg0: memref<8x8x16xf32, #tpu.memory_space<vmem>>, %arg1: memref<8x1xi32, #tpu.memory_space<vmem>>, %arg2: memref<16x128xbf16, #tpu.memory_space<vmem>>, %arg3: memref<32x128xbf16, #tpu.memory_space<vmem>>, %arg4: memref<1x128xf32, #tpu.memory_space<vmem>>, %arg5: memref<32x128xbf16, #tpu.memory_space<vmem>>, %arg6: memref<32x128xbf16, #tpu.memory_space<vmem>>, %arg7: memref<1x128xf32, #tpu.memory_space<vmem>>, %arg8: memref<32x8xbf16, #tpu.memory_space<vmem>>, %arg9: memref<1x8xf32, #tpu.memory_space<vmem>>, %arg10: memref<8x8xf32, #tpu.memory_space<vmem>>) attributes {dimension_semantics = [], scalar_prefetch = 0 : i64, scratch_operands = 0 : i64, tpu.core_type = #tpu.core_type<tc>} {
    %c0 = arith.constant 0 : index
    %c0_0 = arith.constant 0 : index
    %c0_1 = arith.constant 0 : index
    %0 = vector.load %arg0[%c0, %c0_0, %c0_1] : memref<8x8x16xf32, #tpu.memory_space<vmem>>, vector<8x8x16xf32>
    %c0_2 = arith.constant 0 : index
    %c0_3 = arith.constant 0 : index
    %1 = vector.load %arg1[%c0_2, %c0_3] : memref<8x1xi32, #tpu.memory_space<vmem>>, vector<8x1xi32>
    %cst = arith.constant 0.000000e+00 : f32
    %2 = vector.broadcast %cst : f32 to vector<8x32xf32>
    %3 = vector.extract_strided_slice %0 {offsets = [0, 0, 0], sizes = [8, 1, 16], strides = [1, 1, 1]} : vector<8x8x16xf32> to vector<8x1x16xf32>
    %4 = vector.shape_cast %3 : vector<8x1x16xf32> to vector<8x16xf32>
    %5 = vector.extract_strided_slice %0 {offsets = [0, 1, 0], sizes = [8, 1, 16], strides = [1, 1, 1]} : vector<8x8x16xf32> to vector<8x1x16xf32>
    %6 = vector.shape_cast %5 : vector<8x1x16xf32> to vector<8x16xf32>
    %7 = vector.extract_strided_slice %0 {offsets = [0, 2, 0], sizes = [8, 1, 16], strides = [1, 1, 1]} : vector<8x8x16xf32> to vector<8x1x16xf32>
    %8 = vector.shape_cast %7 : vector<8x1x16xf32> to vector<8x16xf32>
    %9 = vector.extract_strided_slice %0 {offsets = [0, 3, 0], sizes = [8, 1, 16], strides = [1, 1, 1]} : vector<8x8x16xf32> to vector<8x1x16xf32>
    %10 = vector.shape_cast %9 : vector<8x1x16xf32> to vector<8x16xf32>
    %11 = vector.extract_strided_slice %0 {offsets = [0, 4, 0], sizes = [8, 1, 16], strides = [1, 1, 1]} : vector<8x8x16xf32> to vector<8x1x16xf32>
    %12 = vector.shape_cast %11 : vector<8x1x16xf32> to vector<8x16xf32>
    %13 = vector.extract_strided_slice %0 {offsets = [0, 5, 0], sizes = [8, 1, 16], strides = [1, 1, 1]} : vector<8x8x16xf32> to vector<8x1x16xf32>
    %14 = vector.shape_cast %13 : vector<8x1x16xf32> to vector<8x16xf32>
    %15 = vector.extract_strided_slice %0 {offsets = [0, 6, 0], sizes = [8, 1, 16], strides = [1, 1, 1]} : vector<8x8x16xf32> to vector<8x1x16xf32>
    %16 = vector.shape_cast %15 : vector<8x1x16xf32> to vector<8x16xf32>
    %17 = vector.extract_strided_slice %0 {offsets = [0, 7, 0], sizes = [8, 1, 16], strides = [1, 1, 1]} : vector<8x8x16xf32> to vector<8x1x16xf32>
    %18 = vector.shape_cast %17 : vector<8x1x16xf32> to vector<8x16xf32>
    %19 = tpu.concatenate %4, %6, %8, %10, %12, %14, %16, %18 in 0 : vector<8x16xf32>, vector<8x16xf32>, vector<8x16xf32>, vector<8x16xf32>, vector<8x16xf32>, vector<8x16xf32>, vector<8x16xf32>, vector<8x16xf32> -> vector<64x16xf32>
    %c0_4 = arith.constant 0 : index
    %c0_5 = arith.constant 0 : index
    %20 = vector.load %arg2[%c0_4, %c0_5] : memref<16x128xbf16, #tpu.memory_space<vmem>>, vector<16x128xbf16>
    %c0_6 = arith.constant 0 : index
    %c0_7 = arith.constant 0 : index
    %21 = vector.load %arg3[%c0_6, %c0_7] : memref<32x128xbf16, #tpu.memory_space<vmem>>, vector<32x128xbf16>
    %c0_8 = arith.constant 0 : index
    %c0_9 = arith.constant 0 : index
    %22 = vector.load %arg4[%c0_8, %c0_9] : memref<1x128xf32, #tpu.memory_space<vmem>>, vector<1x128xf32>
    %23 = arith.truncf %19 : vector<64x16xf32> to vector<64x16xbf16>
    %cst_10 = arith.constant dense<0.000000e+00> : vector<64x128xf32>
    %24 = tpu.matmul %23, %20, %cst_10 {dimension_numbers = #tpu.dot_dimension_numbers<[1], [0], [0], [1], [0, 0, 1, 1], [], []>} : vector<64x16xbf16>, vector<16x128xbf16>, vector<64x128xf32> -> vector<64x128xf32>
    %25 = vector.broadcast %22 : vector<1x128xf32> to vector<64x128xf32>
    %26 = arith.addf %24, %25 : vector<64x128xf32>
    %27 = vector.shape_cast %26 : vector<64x128xf32> to vector<8x8x128xf32>
    %cst_11 = arith.constant 0.000000e+00 : f32
    %28 = vector.broadcast %cst_11 : f32 to vector<8x32xf32>
    %cst_12 = arith.constant 0.000000e+00 : f32
    %29 = vector.broadcast %cst_12 : f32 to vector<8x32xf32>
    %30 = vector.extract_strided_slice %27 {offsets = [0, 0, 0], sizes = [1, 8, 128], strides = [1, 1, 1]} : vector<8x8x128xf32> to vector<1x8x128xf32>
    %31 = vector.shape_cast %30 : vector<1x8x128xf32> to vector<8x128xf32>
    %32 = arith.truncf %28 : vector<8x32xf32> to vector<8x32xbf16>
    %cst_13 = arith.constant dense<0.000000e+00> : vector<8x128xf32>
    %33 = tpu.matmul %32, %21, %cst_13 {dimension_numbers = #tpu.dot_dimension_numbers<[1], [0], [0], [1], [0, 0, 1, 1], [], []>} : vector<8x32xbf16>, vector<32x128xbf16>, vector<8x128xf32> -> vector<8x128xf32>
    %34 = arith.addf %31, %33 : vector<8x128xf32>
    %35 = vector.extract_strided_slice %34 {offsets = [0, 0], sizes = [8, 32], strides = [1, 1]} : vector<8x128xf32> to vector<8x32xf32>
    %36 = arith.negf %35 : vector<8x32xf32>
    %37 = math.exp %36 : vector<8x32xf32>
    %cst_14 = arith.constant 1.000000e+00 : f32
    %38 = vector.broadcast %cst_14 : f32 to vector<8x32xf32>
    %39 = arith.addf %38, %37 : vector<8x32xf32>
    %40 = arith.divf %38, %39 : vector<8x32xf32>
    %41 = vector.extract_strided_slice %34 {offsets = [0, 32], sizes = [8, 32], strides = [1, 1]} : vector<8x128xf32> to vector<8x32xf32>
    %42 = arith.negf %41 : vector<8x32xf32>
    %43 = math.exp %42 : vector<8x32xf32>
    %cst_15 = arith.constant 1.000000e+00 : f32
    %44 = vector.broadcast %cst_15 : f32 to vector<8x32xf32>
    %45 = arith.addf %44, %43 : vector<8x32xf32>
    %46 = arith.divf %44, %45 : vector<8x32xf32>
    %47 = vector.extract_strided_slice %34 {offsets = [0, 64], sizes = [8, 32], strides = [1, 1]} : vector<8x128xf32> to vector<8x32xf32>
    %48 = math.tanh %47 : vector<8x32xf32>
    %49 = vector.extract_strided_slice %34 {offsets = [0, 96], sizes = [8, 32], strides = [1, 1]} : vector<8x128xf32> to vector<8x32xf32>
    %50 = arith.negf %49 : vector<8x32xf32>
    %51 = math.exp %50 : vector<8x32xf32>
    %cst_16 = arith.constant 1.000000e+00 : f32
    %52 = vector.broadcast %cst_16 : f32 to vector<8x32xf32>
    %53 = arith.addf %52, %51 : vector<8x32xf32>
    %54 = arith.divf %52, %53 : vector<8x32xf32>
    %55 = arith.mulf %46, %29 : vector<8x32xf32>
    %56 = arith.mulf %40, %48 : vector<8x32xf32>
    %57 = arith.addf %55, %56 : vector<8x32xf32>
    %58 = math.tanh %57 : vector<8x32xf32>
    %59 = arith.mulf %54, %58 : vector<8x32xf32>
    %60 = vector.extract_strided_slice %27 {offsets = [1, 0, 0], sizes = [1, 8, 128], strides = [1, 1, 1]} : vector<8x8x128xf32> to vector<1x8x128xf32>
    %61 = vector.shape_cast %60 : vector<1x8x128xf32> to vector<8x128xf32>
    %62 = arith.truncf %59 : vector<8x32xf32> to vector<8x32xbf16>
    %cst_17 = arith.constant dense<0.000000e+00> : vector<8x128xf32>
    %63 = tpu.matmul %62, %21, %cst_17 {dimension_numbers = #tpu.dot_dimension_numbers<[1], [0], [0], [1], [0, 0, 1, 1], [], []>} : vector<8x32xbf16>, vector<32x128xbf16>, vector<8x128xf32> -> vector<8x128xf32>
    %64 = arith.addf %61, %63 : vector<8x128xf32>
    %65 = vector.extract_strided_slice %64 {offsets = [0, 0], sizes = [8, 32], strides = [1, 1]} : vector<8x128xf32> to vector<8x32xf32>
    %66 = arith.negf %65 : vector<8x32xf32>
    %67 = math.exp %66 : vector<8x32xf32>
    %cst_18 = arith.constant 1.000000e+00 : f32
    %68 = vector.broadcast %cst_18 : f32 to vector<8x32xf32>
    %69 = arith.addf %68, %67 : vector<8x32xf32>
    %70 = arith.divf %68, %69 : vector<8x32xf32>
    %71 = vector.extract_strided_slice %64 {offsets = [0, 32], sizes = [8, 32], strides = [1, 1]} : vector<8x128xf32> to vector<8x32xf32>
    %72 = arith.negf %71 : vector<8x32xf32>
    %73 = math.exp %72 : vector<8x32xf32>
    %cst_19 = arith.constant 1.000000e+00 : f32
    %74 = vector.broadcast %cst_19 : f32 to vector<8x32xf32>
    %75 = arith.addf %74, %73 : vector<8x32xf32>
    %76 = arith.divf %74, %75 : vector<8x32xf32>
    %77 = vector.extract_strided_slice %64 {offsets = [0, 64], sizes = [8, 32], strides = [1, 1]} : vector<8x128xf32> to vector<8x32xf32>
    %78 = math.tanh %77 : vector<8x32xf32>
    %79 = vector.extract_strided_slice %64 {offsets = [0, 96], sizes = [8, 32], strides = [1, 1]} : vector<8x128xf32> to vector<8x32xf32>
    %80 = arith.negf %79 : vector<8x32xf32>
    %81 = math.exp %80 : vector<8x32xf32>
    %cst_20 = arith.constant 1.000000e+00 : f32
    %82 = vector.broadcast %cst_20 : f32 to vector<8x32xf32>
    %83 = arith.addf %82, %81 : vector<8x32xf32>
    %84 = arith.divf %82, %83 : vector<8x32xf32>
    %85 = arith.mulf %76, %57 : vector<8x32xf32>
    %86 = arith.mulf %70, %78 : vector<8x32xf32>
    %87 = arith.addf %85, %86 : vector<8x32xf32>
    %88 = math.tanh %87 : vector<8x32xf32>
    %89 = arith.mulf %84, %88 : vector<8x32xf32>
    %90 = vector.extract_strided_slice %27 {offsets = [2, 0, 0], sizes = [1, 8, 128], strides = [1, 1, 1]} : vector<8x8x128xf32> to vector<1x8x128xf32>
    %91 = vector.shape_cast %90 : vector<1x8x128xf32> to vector<8x128xf32>
    %92 = arith.truncf %89 : vector<8x32xf32> to vector<8x32xbf16>
    %cst_21 = arith.constant dense<0.000000e+00> : vector<8x128xf32>
    %93 = tpu.matmul %92, %21, %cst_21 {dimension_numbers = #tpu.dot_dimension_numbers<[1], [0], [0], [1], [0, 0, 1, 1], [], []>} : vector<8x32xbf16>, vector<32x128xbf16>, vector<8x128xf32> -> vector<8x128xf32>
    %94 = arith.addf %91, %93 : vector<8x128xf32>
    %95 = vector.extract_strided_slice %94 {offsets = [0, 0], sizes = [8, 32], strides = [1, 1]} : vector<8x128xf32> to vector<8x32xf32>
    %96 = arith.negf %95 : vector<8x32xf32>
    %97 = math.exp %96 : vector<8x32xf32>
    %cst_22 = arith.constant 1.000000e+00 : f32
    %98 = vector.broadcast %cst_22 : f32 to vector<8x32xf32>
    %99 = arith.addf %98, %97 : vector<8x32xf32>
    %100 = arith.divf %98, %99 : vector<8x32xf32>
    %101 = vector.extract_strided_slice %94 {offsets = [0, 32], sizes = [8, 32], strides = [1, 1]} : vector<8x128xf32> to vector<8x32xf32>
    %102 = arith.negf %101 : vector<8x32xf32>
    %103 = math.exp %102 : vector<8x32xf32>
    %cst_23 = arith.constant 1.000000e+00 : f32
    %104 = vector.broadcast %cst_23 : f32 to vector<8x32xf32>
    %105 = arith.addf %104, %103 : vector<8x32xf32>
    %106 = arith.divf %104, %105 : vector<8x32xf32>
    %107 = vector.extract_strided_slice %94 {offsets = [0, 64], sizes = [8, 32], strides = [1, 1]} : vector<8x128xf32> to vector<8x32xf32>
    %108 = math.tanh %107 : vector<8x32xf32>
    %109 = vector.extract_strided_slice %94 {offsets = [0, 96], sizes = [8, 32], strides = [1, 1]} : vector<8x128xf32> to vector<8x32xf32>
    %110 = arith.negf %109 : vector<8x32xf32>
    %111 = math.exp %110 : vector<8x32xf32>
    %cst_24 = arith.constant 1.000000e+00 : f32
    %112 = vector.broadcast %cst_24 : f32 to vector<8x32xf32>
    %113 = arith.addf %112, %111 : vector<8x32xf32>
    %114 = arith.divf %112, %113 : vector<8x32xf32>
    %115 = arith.mulf %106, %87 : vector<8x32xf32>
    %116 = arith.mulf %100, %108 : vector<8x32xf32>
    %117 = arith.addf %115, %116 : vector<8x32xf32>
    %118 = math.tanh %117 : vector<8x32xf32>
    %119 = arith.mulf %114, %118 : vector<8x32xf32>
    %120 = vector.extract_strided_slice %27 {offsets = [3, 0, 0], sizes = [1, 8, 128], strides = [1, 1, 1]} : vector<8x8x128xf32> to vector<1x8x128xf32>
    %121 = vector.shape_cast %120 : vector<1x8x128xf32> to vector<8x128xf32>
    %122 = arith.truncf %119 : vector<8x32xf32> to vector<8x32xbf16>
    %cst_25 = arith.constant dense<0.000000e+00> : vector<8x128xf32>
    %123 = tpu.matmul %122, %21, %cst_25 {dimension_numbers = #tpu.dot_dimension_numbers<[1], [0], [0], [1], [0, 0, 1, 1], [], []>} : vector<8x32xbf16>, vector<32x128xbf16>, vector<8x128xf32> -> vector<8x128xf32>
    %124 = arith.addf %121, %123 : vector<8x128xf32>
    %125 = vector.extract_strided_slice %124 {offsets = [0, 0], sizes = [8, 32], strides = [1, 1]} : vector<8x128xf32> to vector<8x32xf32>
    %126 = arith.negf %125 : vector<8x32xf32>
    %127 = math.exp %126 : vector<8x32xf32>
    %cst_26 = arith.constant 1.000000e+00 : f32
    %128 = vector.broadcast %cst_26 : f32 to vector<8x32xf32>
    %129 = arith.addf %128, %127 : vector<8x32xf32>
    %130 = arith.divf %128, %129 : vector<8x32xf32>
    %131 = vector.extract_strided_slice %124 {offsets = [0, 32], sizes = [8, 32], strides = [1, 1]} : vector<8x128xf32> to vector<8x32xf32>
    %132 = arith.negf %131 : vector<8x32xf32>
    %133 = math.exp %132 : vector<8x32xf32>
    %cst_27 = arith.constant 1.000000e+00 : f32
    %134 = vector.broadcast %cst_27 : f32 to vector<8x32xf32>
    %135 = arith.addf %134, %133 : vector<8x32xf32>
    %136 = arith.divf %134, %135 : vector<8x32xf32>
    %137 = vector.extract_strided_slice %124 {offsets = [0, 64], sizes = [8, 32], strides = [1, 1]} : vector<8x128xf32> to vector<8x32xf32>
    %138 = math.tanh %137 : vector<8x32xf32>
    %139 = vector.extract_strided_slice %124 {offsets = [0, 96], sizes = [8, 32], strides = [1, 1]} : vector<8x128xf32> to vector<8x32xf32>
    %140 = arith.negf %139 : vector<8x32xf32>
    %141 = math.exp %140 : vector<8x32xf32>
    %cst_28 = arith.constant 1.000000e+00 : f32
    %142 = vector.broadcast %cst_28 : f32 to vector<8x32xf32>
    %143 = arith.addf %142, %141 : vector<8x32xf32>
    %144 = arith.divf %142, %143 : vector<8x32xf32>
    %145 = arith.mulf %136, %117 : vector<8x32xf32>
    %146 = arith.mulf %130, %138 : vector<8x32xf32>
    %147 = arith.addf %145, %146 : vector<8x32xf32>
    %148 = math.tanh %147 : vector<8x32xf32>
    %149 = arith.mulf %144, %148 : vector<8x32xf32>
    %150 = vector.extract_strided_slice %27 {offsets = [4, 0, 0], sizes = [1, 8, 128], strides = [1, 1, 1]} : vector<8x8x128xf32> to vector<1x8x128xf32>
    %151 = vector.shape_cast %150 : vector<1x8x128xf32> to vector<8x128xf32>
    %152 = arith.truncf %149 : vector<8x32xf32> to vector<8x32xbf16>
    %cst_29 = arith.constant dense<0.000000e+00> : vector<8x128xf32>
    %153 = tpu.matmul %152, %21, %cst_29 {dimension_numbers = #tpu.dot_dimension_numbers<[1], [0], [0], [1], [0, 0, 1, 1], [], []>} : vector<8x32xbf16>, vector<32x128xbf16>, vector<8x128xf32> -> vector<8x128xf32>
    %154 = arith.addf %151, %153 : vector<8x128xf32>
    %155 = vector.extract_strided_slice %154 {offsets = [0, 0], sizes = [8, 32], strides = [1, 1]} : vector<8x128xf32> to vector<8x32xf32>
    %156 = arith.negf %155 : vector<8x32xf32>
    %157 = math.exp %156 : vector<8x32xf32>
    %cst_30 = arith.constant 1.000000e+00 : f32
    %158 = vector.broadcast %cst_30 : f32 to vector<8x32xf32>
    %159 = arith.addf %158, %157 : vector<8x32xf32>
    %160 = arith.divf %158, %159 : vector<8x32xf32>
    %161 = vector.extract_strided_slice %154 {offsets = [0, 32], sizes = [8, 32], strides = [1, 1]} : vector<8x128xf32> to vector<8x32xf32>
    %162 = arith.negf %161 : vector<8x32xf32>
    %163 = math.exp %162 : vector<8x32xf32>
    %cst_31 = arith.constant 1.000000e+00 : f32
    %164 = vector.broadcast %cst_31 : f32 to vector<8x32xf32>
    %165 = arith.addf %164, %163 : vector<8x32xf32>
    %166 = arith.divf %164, %165 : vector<8x32xf32>
    %167 = vector.extract_strided_slice %154 {offsets = [0, 64], sizes = [8, 32], strides = [1, 1]} : vector<8x128xf32> to vector<8x32xf32>
    %168 = math.tanh %167 : vector<8x32xf32>
    %169 = vector.extract_strided_slice %154 {offsets = [0, 96], sizes = [8, 32], strides = [1, 1]} : vector<8x128xf32> to vector<8x32xf32>
    %170 = arith.negf %169 : vector<8x32xf32>
    %171 = math.exp %170 : vector<8x32xf32>
    %cst_32 = arith.constant 1.000000e+00 : f32
    %172 = vector.broadcast %cst_32 : f32 to vector<8x32xf32>
    %173 = arith.addf %172, %171 : vector<8x32xf32>
    %174 = arith.divf %172, %173 : vector<8x32xf32>
    %175 = arith.mulf %166, %147 : vector<8x32xf32>
    %176 = arith.mulf %160, %168 : vector<8x32xf32>
    %177 = arith.addf %175, %176 : vector<8x32xf32>
    %178 = math.tanh %177 : vector<8x32xf32>
    %179 = arith.mulf %174, %178 : vector<8x32xf32>
    %180 = vector.extract_strided_slice %27 {offsets = [5, 0, 0], sizes = [1, 8, 128], strides = [1, 1, 1]} : vector<8x8x128xf32> to vector<1x8x128xf32>
    %181 = vector.shape_cast %180 : vector<1x8x128xf32> to vector<8x128xf32>
    %182 = arith.truncf %179 : vector<8x32xf32> to vector<8x32xbf16>
    %cst_33 = arith.constant dense<0.000000e+00> : vector<8x128xf32>
    %183 = tpu.matmul %182, %21, %cst_33 {dimension_numbers = #tpu.dot_dimension_numbers<[1], [0], [0], [1], [0, 0, 1, 1], [], []>} : vector<8x32xbf16>, vector<32x128xbf16>, vector<8x128xf32> -> vector<8x128xf32>
    %184 = arith.addf %181, %183 : vector<8x128xf32>
    %185 = vector.extract_strided_slice %184 {offsets = [0, 0], sizes = [8, 32], strides = [1, 1]} : vector<8x128xf32> to vector<8x32xf32>
    %186 = arith.negf %185 : vector<8x32xf32>
    %187 = math.exp %186 : vector<8x32xf32>
    %cst_34 = arith.constant 1.000000e+00 : f32
    %188 = vector.broadcast %cst_34 : f32 to vector<8x32xf32>
    %189 = arith.addf %188, %187 : vector<8x32xf32>
    %190 = arith.divf %188, %189 : vector<8x32xf32>
    %191 = vector.extract_strided_slice %184 {offsets = [0, 32], sizes = [8, 32], strides = [1, 1]} : vector<8x128xf32> to vector<8x32xf32>
    %192 = arith.negf %191 : vector<8x32xf32>
    %193 = math.exp %192 : vector<8x32xf32>
    %cst_35 = arith.constant 1.000000e+00 : f32
    %194 = vector.broadcast %cst_35 : f32 to vector<8x32xf32>
    %195 = arith.addf %194, %193 : vector<8x32xf32>
    %196 = arith.divf %194, %195 : vector<8x32xf32>
    %197 = vector.extract_strided_slice %184 {offsets = [0, 64], sizes = [8, 32], strides = [1, 1]} : vector<8x128xf32> to vector<8x32xf32>
    %198 = math.tanh %197 : vector<8x32xf32>
    %199 = vector.extract_strided_slice %184 {offsets = [0, 96], sizes = [8, 32], strides = [1, 1]} : vector<8x128xf32> to vector<8x32xf32>
    %200 = arith.negf %199 : vector<8x32xf32>
    %201 = math.exp %200 : vector<8x32xf32>
    %cst_36 = arith.constant 1.000000e+00 : f32
    %202 = vector.broadcast %cst_36 : f32 to vector<8x32xf32>
    %203 = arith.addf %202, %201 : vector<8x32xf32>
    %204 = arith.divf %202, %203 : vector<8x32xf32>
    %205 = arith.mulf %196, %177 : vector<8x32xf32>
    %206 = arith.mulf %190, %198 : vector<8x32xf32>
    %207 = arith.addf %205, %206 : vector<8x32xf32>
    %208 = math.tanh %207 : vector<8x32xf32>
    %209 = arith.mulf %204, %208 : vector<8x32xf32>
    %210 = vector.extract_strided_slice %27 {offsets = [6, 0, 0], sizes = [1, 8, 128], strides = [1, 1, 1]} : vector<8x8x128xf32> to vector<1x8x128xf32>
    %211 = vector.shape_cast %210 : vector<1x8x128xf32> to vector<8x128xf32>
    %212 = arith.truncf %209 : vector<8x32xf32> to vector<8x32xbf16>
    %cst_37 = arith.constant dense<0.000000e+00> : vector<8x128xf32>
    %213 = tpu.matmul %212, %21, %cst_37 {dimension_numbers = #tpu.dot_dimension_numbers<[1], [0], [0], [1], [0, 0, 1, 1], [], []>} : vector<8x32xbf16>, vector<32x128xbf16>, vector<8x128xf32> -> vector<8x128xf32>
    %214 = arith.addf %211, %213 : vector<8x128xf32>
    %215 = vector.extract_strided_slice %214 {offsets = [0, 0], sizes = [8, 32], strides = [1, 1]} : vector<8x128xf32> to vector<8x32xf32>
    %216 = arith.negf %215 : vector<8x32xf32>
    %217 = math.exp %216 : vector<8x32xf32>
    %cst_38 = arith.constant 1.000000e+00 : f32
    %218 = vector.broadcast %cst_38 : f32 to vector<8x32xf32>
    %219 = arith.addf %218, %217 : vector<8x32xf32>
    %220 = arith.divf %218, %219 : vector<8x32xf32>
    %221 = vector.extract_strided_slice %214 {offsets = [0, 32], sizes = [8, 32], strides = [1, 1]} : vector<8x128xf32> to vector<8x32xf32>
    %222 = arith.negf %221 : vector<8x32xf32>
    %223 = math.exp %222 : vector<8x32xf32>
    %cst_39 = arith.constant 1.000000e+00 : f32
    %224 = vector.broadcast %cst_39 : f32 to vector<8x32xf32>
    %225 = arith.addf %224, %223 : vector<8x32xf32>
    %226 = arith.divf %224, %225 : vector<8x32xf32>
    %227 = vector.extract_strided_slice %214 {offsets = [0, 64], sizes = [8, 32], strides = [1, 1]} : vector<8x128xf32> to vector<8x32xf32>
    %228 = math.tanh %227 : vector<8x32xf32>
    %229 = vector.extract_strided_slice %214 {offsets = [0, 96], sizes = [8, 32], strides = [1, 1]} : vector<8x128xf32> to vector<8x32xf32>
    %230 = arith.negf %229 : vector<8x32xf32>
    %231 = math.exp %230 : vector<8x32xf32>
    %cst_40 = arith.constant 1.000000e+00 : f32
    %232 = vector.broadcast %cst_40 : f32 to vector<8x32xf32>
    %233 = arith.addf %232, %231 : vector<8x32xf32>
    %234 = arith.divf %232, %233 : vector<8x32xf32>
    %235 = arith.mulf %226, %207 : vector<8x32xf32>
    %236 = arith.mulf %220, %228 : vector<8x32xf32>
    %237 = arith.addf %235, %236 : vector<8x32xf32>
    %238 = math.tanh %237 : vector<8x32xf32>
    %239 = arith.mulf %234, %238 : vector<8x32xf32>
    %240 = vector.extract_strided_slice %27 {offsets = [7, 0, 0], sizes = [1, 8, 128], strides = [1, 1, 1]} : vector<8x8x128xf32> to vector<1x8x128xf32>
    %241 = vector.shape_cast %240 : vector<1x8x128xf32> to vector<8x128xf32>
    %242 = arith.truncf %239 : vector<8x32xf32> to vector<8x32xbf16>
    %cst_41 = arith.constant dense<0.000000e+00> : vector<8x128xf32>
    %243 = tpu.matmul %242, %21, %cst_41 {dimension_numbers = #tpu.dot_dimension_numbers<[1], [0], [0], [1], [0, 0, 1, 1], [], []>} : vector<8x32xbf16>, vector<32x128xbf16>, vector<8x128xf32> -> vector<8x128xf32>
    %244 = arith.addf %241, %243 : vector<8x128xf32>
    %245 = vector.extract_strided_slice %244 {offsets = [0, 0], sizes = [8, 32], strides = [1, 1]} : vector<8x128xf32> to vector<8x32xf32>
    %246 = arith.negf %245 : vector<8x32xf32>
    %247 = math.exp %246 : vector<8x32xf32>
    %cst_42 = arith.constant 1.000000e+00 : f32
    %248 = vector.broadcast %cst_42 : f32 to vector<8x32xf32>
    %249 = arith.addf %248, %247 : vector<8x32xf32>
    %250 = arith.divf %248, %249 : vector<8x32xf32>
    %251 = vector.extract_strided_slice %244 {offsets = [0, 32], sizes = [8, 32], strides = [1, 1]} : vector<8x128xf32> to vector<8x32xf32>
    %252 = arith.negf %251 : vector<8x32xf32>
    %253 = math.exp %252 : vector<8x32xf32>
    %cst_43 = arith.constant 1.000000e+00 : f32
    %254 = vector.broadcast %cst_43 : f32 to vector<8x32xf32>
    %255 = arith.addf %254, %253 : vector<8x32xf32>
    %256 = arith.divf %254, %255 : vector<8x32xf32>
    %257 = vector.extract_strided_slice %244 {offsets = [0, 64], sizes = [8, 32], strides = [1, 1]} : vector<8x128xf32> to vector<8x32xf32>
    %258 = math.tanh %257 : vector<8x32xf32>
    %259 = vector.extract_strided_slice %244 {offsets = [0, 96], sizes = [8, 32], strides = [1, 1]} : vector<8x128xf32> to vector<8x32xf32>
    %260 = arith.negf %259 : vector<8x32xf32>
    %261 = math.exp %260 : vector<8x32xf32>
    %cst_44 = arith.constant 1.000000e+00 : f32
    %262 = vector.broadcast %cst_44 : f32 to vector<8x32xf32>
    %263 = arith.addf %262, %261 : vector<8x32xf32>
    %264 = arith.divf %262, %263 : vector<8x32xf32>
    %265 = arith.mulf %256, %237 : vector<8x32xf32>
    %266 = arith.mulf %250, %258 : vector<8x32xf32>
    %267 = arith.addf %265, %266 : vector<8x32xf32>
    %268 = math.tanh %267 : vector<8x32xf32>
    %269 = arith.mulf %264, %268 : vector<8x32xf32>
    %270 = tpu.concatenate %59, %89, %119, %149, %179, %209, %239, %269 in 0 : vector<8x32xf32>, vector<8x32xf32>, vector<8x32xf32>, vector<8x32xf32>, vector<8x32xf32>, vector<8x32xf32>, vector<8x32xf32>, vector<8x32xf32> -> vector<64x32xf32>
    %c0_45 = arith.constant 0 : index
    %c0_46 = arith.constant 0 : index
    %271 = vector.load %arg5[%c0_45, %c0_46] : memref<32x128xbf16, #tpu.memory_space<vmem>>, vector<32x128xbf16>
    %c0_47 = arith.constant 0 : index
    %c0_48 = arith.constant 0 : index
    %272 = vector.load %arg6[%c0_47, %c0_48] : memref<32x128xbf16, #tpu.memory_space<vmem>>, vector<32x128xbf16>
    %c0_49 = arith.constant 0 : index
    %c0_50 = arith.constant 0 : index
    %273 = vector.load %arg7[%c0_49, %c0_50] : memref<1x128xf32, #tpu.memory_space<vmem>>, vector<1x128xf32>
    %274 = arith.truncf %270 : vector<64x32xf32> to vector<64x32xbf16>
    %cst_51 = arith.constant dense<0.000000e+00> : vector<64x128xf32>
    %275 = tpu.matmul %274, %271, %cst_51 {dimension_numbers = #tpu.dot_dimension_numbers<[1], [0], [0], [1], [0, 0, 1, 1], [], []>} : vector<64x32xbf16>, vector<32x128xbf16>, vector<64x128xf32> -> vector<64x128xf32>
    %276 = vector.broadcast %273 : vector<1x128xf32> to vector<64x128xf32>
    %277 = arith.addf %275, %276 : vector<64x128xf32>
    %278 = vector.shape_cast %277 : vector<64x128xf32> to vector<8x8x128xf32>
    %cst_52 = arith.constant 0.000000e+00 : f32
    %279 = vector.broadcast %cst_52 : f32 to vector<8x32xf32>
    %cst_53 = arith.constant 0.000000e+00 : f32
    %280 = vector.broadcast %cst_53 : f32 to vector<8x32xf32>
    %281 = vector.extract_strided_slice %278 {offsets = [0, 0, 0], sizes = [1, 8, 128], strides = [1, 1, 1]} : vector<8x8x128xf32> to vector<1x8x128xf32>
    %282 = vector.shape_cast %281 : vector<1x8x128xf32> to vector<8x128xf32>
    %283 = arith.truncf %279 : vector<8x32xf32> to vector<8x32xbf16>
    %cst_54 = arith.constant dense<0.000000e+00> : vector<8x128xf32>
    %284 = tpu.matmul %283, %272, %cst_54 {dimension_numbers = #tpu.dot_dimension_numbers<[1], [0], [0], [1], [0, 0, 1, 1], [], []>} : vector<8x32xbf16>, vector<32x128xbf16>, vector<8x128xf32> -> vector<8x128xf32>
    %285 = arith.addf %282, %284 : vector<8x128xf32>
    %286 = vector.extract_strided_slice %285 {offsets = [0, 0], sizes = [8, 32], strides = [1, 1]} : vector<8x128xf32> to vector<8x32xf32>
    %287 = arith.negf %286 : vector<8x32xf32>
    %288 = math.exp %287 : vector<8x32xf32>
    %cst_55 = arith.constant 1.000000e+00 : f32
    %289 = vector.broadcast %cst_55 : f32 to vector<8x32xf32>
    %290 = arith.addf %289, %288 : vector<8x32xf32>
    %291 = arith.divf %289, %290 : vector<8x32xf32>
    %292 = vector.extract_strided_slice %285 {offsets = [0, 32], sizes = [8, 32], strides = [1, 1]} : vector<8x128xf32> to vector<8x32xf32>
    %293 = arith.negf %292 : vector<8x32xf32>
    %294 = math.exp %293 : vector<8x32xf32>
    %cst_56 = arith.constant 1.000000e+00 : f32
    %295 = vector.broadcast %cst_56 : f32 to vector<8x32xf32>
    %296 = arith.addf %295, %294 : vector<8x32xf32>
    %297 = arith.divf %295, %296 : vector<8x32xf32>
    %298 = vector.extract_strided_slice %285 {offsets = [0, 64], sizes = [8, 32], strides = [1, 1]} : vector<8x128xf32> to vector<8x32xf32>
    %299 = math.tanh %298 : vector<8x32xf32>
    %300 = vector.extract_strided_slice %285 {offsets = [0, 96], sizes = [8, 32], strides = [1, 1]} : vector<8x128xf32> to vector<8x32xf32>
    %301 = arith.negf %300 : vector<8x32xf32>
    %302 = math.exp %301 : vector<8x32xf32>
    %cst_57 = arith.constant 1.000000e+00 : f32
    %303 = vector.broadcast %cst_57 : f32 to vector<8x32xf32>
    %304 = arith.addf %303, %302 : vector<8x32xf32>
    %305 = arith.divf %303, %304 : vector<8x32xf32>
    %306 = arith.mulf %297, %280 : vector<8x32xf32>
    %307 = arith.mulf %291, %299 : vector<8x32xf32>
    %308 = arith.addf %306, %307 : vector<8x32xf32>
    %309 = math.tanh %308 : vector<8x32xf32>
    %310 = arith.mulf %305, %309 : vector<8x32xf32>
    %c1_i32 = arith.constant 1 : i32
    %311 = vector.broadcast %c1_i32 : i32 to vector<8x1xi32>
    %312 = arith.cmpi eq, %1, %311 : vector<8x1xi32>
    %313 = vector.shape_cast %312 : vector<8x1xi1> to vector<8x1xi1>
    %314 = vector.broadcast %313 : vector<8x1xi1> to vector<8x32xi1>
    %315 = arith.select %314, %310, %2 : vector<8x32xi1>, vector<8x32xf32>
    %316 = vector.extract_strided_slice %278 {offsets = [1, 0, 0], sizes = [1, 8, 128], strides = [1, 1, 1]} : vector<8x8x128xf32> to vector<1x8x128xf32>
    %317 = vector.shape_cast %316 : vector<1x8x128xf32> to vector<8x128xf32>
    %318 = arith.truncf %310 : vector<8x32xf32> to vector<8x32xbf16>
    %cst_58 = arith.constant dense<0.000000e+00> : vector<8x128xf32>
    %319 = tpu.matmul %318, %272, %cst_58 {dimension_numbers = #tpu.dot_dimension_numbers<[1], [0], [0], [1], [0, 0, 1, 1], [], []>} : vector<8x32xbf16>, vector<32x128xbf16>, vector<8x128xf32> -> vector<8x128xf32>
    %320 = arith.addf %317, %319 : vector<8x128xf32>
    %321 = vector.extract_strided_slice %320 {offsets = [0, 0], sizes = [8, 32], strides = [1, 1]} : vector<8x128xf32> to vector<8x32xf32>
    %322 = arith.negf %321 : vector<8x32xf32>
    %323 = math.exp %322 : vector<8x32xf32>
    %cst_59 = arith.constant 1.000000e+00 : f32
    %324 = vector.broadcast %cst_59 : f32 to vector<8x32xf32>
    %325 = arith.addf %324, %323 : vector<8x32xf32>
    %326 = arith.divf %324, %325 : vector<8x32xf32>
    %327 = vector.extract_strided_slice %320 {offsets = [0, 32], sizes = [8, 32], strides = [1, 1]} : vector<8x128xf32> to vector<8x32xf32>
    %328 = arith.negf %327 : vector<8x32xf32>
    %329 = math.exp %328 : vector<8x32xf32>
    %cst_60 = arith.constant 1.000000e+00 : f32
    %330 = vector.broadcast %cst_60 : f32 to vector<8x32xf32>
    %331 = arith.addf %330, %329 : vector<8x32xf32>
    %332 = arith.divf %330, %331 : vector<8x32xf32>
    %333 = vector.extract_strided_slice %320 {offsets = [0, 64], sizes = [8, 32], strides = [1, 1]} : vector<8x128xf32> to vector<8x32xf32>
    %334 = math.tanh %333 : vector<8x32xf32>
    %335 = vector.extract_strided_slice %320 {offsets = [0, 96], sizes = [8, 32], strides = [1, 1]} : vector<8x128xf32> to vector<8x32xf32>
    %336 = arith.negf %335 : vector<8x32xf32>
    %337 = math.exp %336 : vector<8x32xf32>
    %cst_61 = arith.constant 1.000000e+00 : f32
    %338 = vector.broadcast %cst_61 : f32 to vector<8x32xf32>
    %339 = arith.addf %338, %337 : vector<8x32xf32>
    %340 = arith.divf %338, %339 : vector<8x32xf32>
    %341 = arith.mulf %332, %308 : vector<8x32xf32>
    %342 = arith.mulf %326, %334 : vector<8x32xf32>
    %343 = arith.addf %341, %342 : vector<8x32xf32>
    %344 = math.tanh %343 : vector<8x32xf32>
    %345 = arith.mulf %340, %344 : vector<8x32xf32>
    %c2_i32 = arith.constant 2 : i32
    %346 = vector.broadcast %c2_i32 : i32 to vector<8x1xi32>
    %347 = arith.cmpi eq, %1, %346 : vector<8x1xi32>
    %348 = vector.shape_cast %347 : vector<8x1xi1> to vector<8x1xi1>
    %349 = vector.broadcast %348 : vector<8x1xi1> to vector<8x32xi1>
    %350 = arith.select %349, %345, %315 : vector<8x32xi1>, vector<8x32xf32>
    %351 = vector.extract_strided_slice %278 {offsets = [2, 0, 0], sizes = [1, 8, 128], strides = [1, 1, 1]} : vector<8x8x128xf32> to vector<1x8x128xf32>
    %352 = vector.shape_cast %351 : vector<1x8x128xf32> to vector<8x128xf32>
    %353 = arith.truncf %345 : vector<8x32xf32> to vector<8x32xbf16>
    %cst_62 = arith.constant dense<0.000000e+00> : vector<8x128xf32>
    %354 = tpu.matmul %353, %272, %cst_62 {dimension_numbers = #tpu.dot_dimension_numbers<[1], [0], [0], [1], [0, 0, 1, 1], [], []>} : vector<8x32xbf16>, vector<32x128xbf16>, vector<8x128xf32> -> vector<8x128xf32>
    %355 = arith.addf %352, %354 : vector<8x128xf32>
    %356 = vector.extract_strided_slice %355 {offsets = [0, 0], sizes = [8, 32], strides = [1, 1]} : vector<8x128xf32> to vector<8x32xf32>
    %357 = arith.negf %356 : vector<8x32xf32>
    %358 = math.exp %357 : vector<8x32xf32>
    %cst_63 = arith.constant 1.000000e+00 : f32
    %359 = vector.broadcast %cst_63 : f32 to vector<8x32xf32>
    %360 = arith.addf %359, %358 : vector<8x32xf32>
    %361 = arith.divf %359, %360 : vector<8x32xf32>
    %362 = vector.extract_strided_slice %355 {offsets = [0, 32], sizes = [8, 32], strides = [1, 1]} : vector<8x128xf32> to vector<8x32xf32>
    %363 = arith.negf %362 : vector<8x32xf32>
    %364 = math.exp %363 : vector<8x32xf32>
    %cst_64 = arith.constant 1.000000e+00 : f32
    %365 = vector.broadcast %cst_64 : f32 to vector<8x32xf32>
    %366 = arith.addf %365, %364 : vector<8x32xf32>
    %367 = arith.divf %365, %366 : vector<8x32xf32>
    %368 = vector.extract_strided_slice %355 {offsets = [0, 64], sizes = [8, 32], strides = [1, 1]} : vector<8x128xf32> to vector<8x32xf32>
    %369 = math.tanh %368 : vector<8x32xf32>
    %370 = vector.extract_strided_slice %355 {offsets = [0, 96], sizes = [8, 32], strides = [1, 1]} : vector<8x128xf32> to vector<8x32xf32>
    %371 = arith.negf %370 : vector<8x32xf32>
    %372 = math.exp %371 : vector<8x32xf32>
    %cst_65 = arith.constant 1.000000e+00 : f32
    %373 = vector.broadcast %cst_65 : f32 to vector<8x32xf32>
    %374 = arith.addf %373, %372 : vector<8x32xf32>
    %375 = arith.divf %373, %374 : vector<8x32xf32>
    %376 = arith.mulf %367, %343 : vector<8x32xf32>
    %377 = arith.mulf %361, %369 : vector<8x32xf32>
    %378 = arith.addf %376, %377 : vector<8x32xf32>
    %379 = math.tanh %378 : vector<8x32xf32>
    %380 = arith.mulf %375, %379 : vector<8x32xf32>
    %c3_i32 = arith.constant 3 : i32
    %381 = vector.broadcast %c3_i32 : i32 to vector<8x1xi32>
    %382 = arith.cmpi eq, %1, %381 : vector<8x1xi32>
    %383 = vector.shape_cast %382 : vector<8x1xi1> to vector<8x1xi1>
    %384 = vector.broadcast %383 : vector<8x1xi1> to vector<8x32xi1>
    %385 = arith.select %384, %380, %350 : vector<8x32xi1>, vector<8x32xf32>
    %386 = vector.extract_strided_slice %278 {offsets = [3, 0, 0], sizes = [1, 8, 128], strides = [1, 1, 1]} : vector<8x8x128xf32> to vector<1x8x128xf32>
    %387 = vector.shape_cast %386 : vector<1x8x128xf32> to vector<8x128xf32>
    %388 = arith.truncf %380 : vector<8x32xf32> to vector<8x32xbf16>
    %cst_66 = arith.constant dense<0.000000e+00> : vector<8x128xf32>
    %389 = tpu.matmul %388, %272, %cst_66 {dimension_numbers = #tpu.dot_dimension_numbers<[1], [0], [0], [1], [0, 0, 1, 1], [], []>} : vector<8x32xbf16>, vector<32x128xbf16>, vector<8x128xf32> -> vector<8x128xf32>
    %390 = arith.addf %387, %389 : vector<8x128xf32>
    %391 = vector.extract_strided_slice %390 {offsets = [0, 0], sizes = [8, 32], strides = [1, 1]} : vector<8x128xf32> to vector<8x32xf32>
    %392 = arith.negf %391 : vector<8x32xf32>
    %393 = math.exp %392 : vector<8x32xf32>
    %cst_67 = arith.constant 1.000000e+00 : f32
    %394 = vector.broadcast %cst_67 : f32 to vector<8x32xf32>
    %395 = arith.addf %394, %393 : vector<8x32xf32>
    %396 = arith.divf %394, %395 : vector<8x32xf32>
    %397 = vector.extract_strided_slice %390 {offsets = [0, 32], sizes = [8, 32], strides = [1, 1]} : vector<8x128xf32> to vector<8x32xf32>
    %398 = arith.negf %397 : vector<8x32xf32>
    %399 = math.exp %398 : vector<8x32xf32>
    %cst_68 = arith.constant 1.000000e+00 : f32
    %400 = vector.broadcast %cst_68 : f32 to vector<8x32xf32>
    %401 = arith.addf %400, %399 : vector<8x32xf32>
    %402 = arith.divf %400, %401 : vector<8x32xf32>
    %403 = vector.extract_strided_slice %390 {offsets = [0, 64], sizes = [8, 32], strides = [1, 1]} : vector<8x128xf32> to vector<8x32xf32>
    %404 = math.tanh %403 : vector<8x32xf32>
    %405 = vector.extract_strided_slice %390 {offsets = [0, 96], sizes = [8, 32], strides = [1, 1]} : vector<8x128xf32> to vector<8x32xf32>
    %406 = arith.negf %405 : vector<8x32xf32>
    %407 = math.exp %406 : vector<8x32xf32>
    %cst_69 = arith.constant 1.000000e+00 : f32
    %408 = vector.broadcast %cst_69 : f32 to vector<8x32xf32>
    %409 = arith.addf %408, %407 : vector<8x32xf32>
    %410 = arith.divf %408, %409 : vector<8x32xf32>
    %411 = arith.mulf %402, %378 : vector<8x32xf32>
    %412 = arith.mulf %396, %404 : vector<8x32xf32>
    %413 = arith.addf %411, %412 : vector<8x32xf32>
    %414 = math.tanh %413 : vector<8x32xf32>
    %415 = arith.mulf %410, %414 : vector<8x32xf32>
    %c4_i32 = arith.constant 4 : i32
    %416 = vector.broadcast %c4_i32 : i32 to vector<8x1xi32>
    %417 = arith.cmpi eq, %1, %416 : vector<8x1xi32>
    %418 = vector.shape_cast %417 : vector<8x1xi1> to vector<8x1xi1>
    %419 = vector.broadcast %418 : vector<8x1xi1> to vector<8x32xi1>
    %420 = arith.select %419, %415, %385 : vector<8x32xi1>, vector<8x32xf32>
    %421 = vector.extract_strided_slice %278 {offsets = [4, 0, 0], sizes = [1, 8, 128], strides = [1, 1, 1]} : vector<8x8x128xf32> to vector<1x8x128xf32>
    %422 = vector.shape_cast %421 : vector<1x8x128xf32> to vector<8x128xf32>
    %423 = arith.truncf %415 : vector<8x32xf32> to vector<8x32xbf16>
    %cst_70 = arith.constant dense<0.000000e+00> : vector<8x128xf32>
    %424 = tpu.matmul %423, %272, %cst_70 {dimension_numbers = #tpu.dot_dimension_numbers<[1], [0], [0], [1], [0, 0, 1, 1], [], []>} : vector<8x32xbf16>, vector<32x128xbf16>, vector<8x128xf32> -> vector<8x128xf32>
    %425 = arith.addf %422, %424 : vector<8x128xf32>
    %426 = vector.extract_strided_slice %425 {offsets = [0, 0], sizes = [8, 32], strides = [1, 1]} : vector<8x128xf32> to vector<8x32xf32>
    %427 = arith.negf %426 : vector<8x32xf32>
    %428 = math.exp %427 : vector<8x32xf32>
    %cst_71 = arith.constant 1.000000e+00 : f32
    %429 = vector.broadcast %cst_71 : f32 to vector<8x32xf32>
    %430 = arith.addf %429, %428 : vector<8x32xf32>
    %431 = arith.divf %429, %430 : vector<8x32xf32>
    %432 = vector.extract_strided_slice %425 {offsets = [0, 32], sizes = [8, 32], strides = [1, 1]} : vector<8x128xf32> to vector<8x32xf32>
    %433 = arith.negf %432 : vector<8x32xf32>
    %434 = math.exp %433 : vector<8x32xf32>
    %cst_72 = arith.constant 1.000000e+00 : f32
    %435 = vector.broadcast %cst_72 : f32 to vector<8x32xf32>
    %436 = arith.addf %435, %434 : vector<8x32xf32>
    %437 = arith.divf %435, %436 : vector<8x32xf32>
    %438 = vector.extract_strided_slice %425 {offsets = [0, 64], sizes = [8, 32], strides = [1, 1]} : vector<8x128xf32> to vector<8x32xf32>
    %439 = math.tanh %438 : vector<8x32xf32>
    %440 = vector.extract_strided_slice %425 {offsets = [0, 96], sizes = [8, 32], strides = [1, 1]} : vector<8x128xf32> to vector<8x32xf32>
    %441 = arith.negf %440 : vector<8x32xf32>
    %442 = math.exp %441 : vector<8x32xf32>
    %cst_73 = arith.constant 1.000000e+00 : f32
    %443 = vector.broadcast %cst_73 : f32 to vector<8x32xf32>
    %444 = arith.addf %443, %442 : vector<8x32xf32>
    %445 = arith.divf %443, %444 : vector<8x32xf32>
    %446 = arith.mulf %437, %413 : vector<8x32xf32>
    %447 = arith.mulf %431, %439 : vector<8x32xf32>
    %448 = arith.addf %446, %447 : vector<8x32xf32>
    %449 = math.tanh %448 : vector<8x32xf32>
    %450 = arith.mulf %445, %449 : vector<8x32xf32>
    %c5_i32 = arith.constant 5 : i32
    %451 = vector.broadcast %c5_i32 : i32 to vector<8x1xi32>
    %452 = arith.cmpi eq, %1, %451 : vector<8x1xi32>
    %453 = vector.shape_cast %452 : vector<8x1xi1> to vector<8x1xi1>
    %454 = vector.broadcast %453 : vector<8x1xi1> to vector<8x32xi1>
    %455 = arith.select %454, %450, %420 : vector<8x32xi1>, vector<8x32xf32>
    %456 = vector.extract_strided_slice %278 {offsets = [5, 0, 0], sizes = [1, 8, 128], strides = [1, 1, 1]} : vector<8x8x128xf32> to vector<1x8x128xf32>
    %457 = vector.shape_cast %456 : vector<1x8x128xf32> to vector<8x128xf32>
    %458 = arith.truncf %450 : vector<8x32xf32> to vector<8x32xbf16>
    %cst_74 = arith.constant dense<0.000000e+00> : vector<8x128xf32>
    %459 = tpu.matmul %458, %272, %cst_74 {dimension_numbers = #tpu.dot_dimension_numbers<[1], [0], [0], [1], [0, 0, 1, 1], [], []>} : vector<8x32xbf16>, vector<32x128xbf16>, vector<8x128xf32> -> vector<8x128xf32>
    %460 = arith.addf %457, %459 : vector<8x128xf32>
    %461 = vector.extract_strided_slice %460 {offsets = [0, 0], sizes = [8, 32], strides = [1, 1]} : vector<8x128xf32> to vector<8x32xf32>
    %462 = arith.negf %461 : vector<8x32xf32>
    %463 = math.exp %462 : vector<8x32xf32>
    %cst_75 = arith.constant 1.000000e+00 : f32
    %464 = vector.broadcast %cst_75 : f32 to vector<8x32xf32>
    %465 = arith.addf %464, %463 : vector<8x32xf32>
    %466 = arith.divf %464, %465 : vector<8x32xf32>
    %467 = vector.extract_strided_slice %460 {offsets = [0, 32], sizes = [8, 32], strides = [1, 1]} : vector<8x128xf32> to vector<8x32xf32>
    %468 = arith.negf %467 : vector<8x32xf32>
    %469 = math.exp %468 : vector<8x32xf32>
    %cst_76 = arith.constant 1.000000e+00 : f32
    %470 = vector.broadcast %cst_76 : f32 to vector<8x32xf32>
    %471 = arith.addf %470, %469 : vector<8x32xf32>
    %472 = arith.divf %470, %471 : vector<8x32xf32>
    %473 = vector.extract_strided_slice %460 {offsets = [0, 64], sizes = [8, 32], strides = [1, 1]} : vector<8x128xf32> to vector<8x32xf32>
    %474 = math.tanh %473 : vector<8x32xf32>
    %475 = vector.extract_strided_slice %460 {offsets = [0, 96], sizes = [8, 32], strides = [1, 1]} : vector<8x128xf32> to vector<8x32xf32>
    %476 = arith.negf %475 : vector<8x32xf32>
    %477 = math.exp %476 : vector<8x32xf32>
    %cst_77 = arith.constant 1.000000e+00 : f32
    %478 = vector.broadcast %cst_77 : f32 to vector<8x32xf32>
    %479 = arith.addf %478, %477 : vector<8x32xf32>
    %480 = arith.divf %478, %479 : vector<8x32xf32>
    %481 = arith.mulf %472, %448 : vector<8x32xf32>
    %482 = arith.mulf %466, %474 : vector<8x32xf32>
    %483 = arith.addf %481, %482 : vector<8x32xf32>
    %484 = math.tanh %483 : vector<8x32xf32>
    %485 = arith.mulf %480, %484 : vector<8x32xf32>
    %c6_i32 = arith.constant 6 : i32
    %486 = vector.broadcast %c6_i32 : i32 to vector<8x1xi32>
    %487 = arith.cmpi eq, %1, %486 : vector<8x1xi32>
    %488 = vector.shape_cast %487 : vector<8x1xi1> to vector<8x1xi1>
    %489 = vector.broadcast %488 : vector<8x1xi1> to vector<8x32xi1>
    %490 = arith.select %489, %485, %455 : vector<8x32xi1>, vector<8x32xf32>
    %491 = vector.extract_strided_slice %278 {offsets = [6, 0, 0], sizes = [1, 8, 128], strides = [1, 1, 1]} : vector<8x8x128xf32> to vector<1x8x128xf32>
    %492 = vector.shape_cast %491 : vector<1x8x128xf32> to vector<8x128xf32>
    %493 = arith.truncf %485 : vector<8x32xf32> to vector<8x32xbf16>
    %cst_78 = arith.constant dense<0.000000e+00> : vector<8x128xf32>
    %494 = tpu.matmul %493, %272, %cst_78 {dimension_numbers = #tpu.dot_dimension_numbers<[1], [0], [0], [1], [0, 0, 1, 1], [], []>} : vector<8x32xbf16>, vector<32x128xbf16>, vector<8x128xf32> -> vector<8x128xf32>
    %495 = arith.addf %492, %494 : vector<8x128xf32>
    %496 = vector.extract_strided_slice %495 {offsets = [0, 0], sizes = [8, 32], strides = [1, 1]} : vector<8x128xf32> to vector<8x32xf32>
    %497 = arith.negf %496 : vector<8x32xf32>
    %498 = math.exp %497 : vector<8x32xf32>
    %cst_79 = arith.constant 1.000000e+00 : f32
    %499 = vector.broadcast %cst_79 : f32 to vector<8x32xf32>
    %500 = arith.addf %499, %498 : vector<8x32xf32>
    %501 = arith.divf %499, %500 : vector<8x32xf32>
    %502 = vector.extract_strided_slice %495 {offsets = [0, 32], sizes = [8, 32], strides = [1, 1]} : vector<8x128xf32> to vector<8x32xf32>
    %503 = arith.negf %502 : vector<8x32xf32>
    %504 = math.exp %503 : vector<8x32xf32>
    %cst_80 = arith.constant 1.000000e+00 : f32
    %505 = vector.broadcast %cst_80 : f32 to vector<8x32xf32>
    %506 = arith.addf %505, %504 : vector<8x32xf32>
    %507 = arith.divf %505, %506 : vector<8x32xf32>
    %508 = vector.extract_strided_slice %495 {offsets = [0, 64], sizes = [8, 32], strides = [1, 1]} : vector<8x128xf32> to vector<8x32xf32>
    %509 = math.tanh %508 : vector<8x32xf32>
    %510 = vector.extract_strided_slice %495 {offsets = [0, 96], sizes = [8, 32], strides = [1, 1]} : vector<8x128xf32> to vector<8x32xf32>
    %511 = arith.negf %510 : vector<8x32xf32>
    %512 = math.exp %511 : vector<8x32xf32>
    %cst_81 = arith.constant 1.000000e+00 : f32
    %513 = vector.broadcast %cst_81 : f32 to vector<8x32xf32>
    %514 = arith.addf %513, %512 : vector<8x32xf32>
    %515 = arith.divf %513, %514 : vector<8x32xf32>
    %516 = arith.mulf %507, %483 : vector<8x32xf32>
    %517 = arith.mulf %501, %509 : vector<8x32xf32>
    %518 = arith.addf %516, %517 : vector<8x32xf32>
    %519 = math.tanh %518 : vector<8x32xf32>
    %520 = arith.mulf %515, %519 : vector<8x32xf32>
    %c7_i32 = arith.constant 7 : i32
    %521 = vector.broadcast %c7_i32 : i32 to vector<8x1xi32>
    %522 = arith.cmpi eq, %1, %521 : vector<8x1xi32>
    %523 = vector.shape_cast %522 : vector<8x1xi1> to vector<8x1xi1>
    %524 = vector.broadcast %523 : vector<8x1xi1> to vector<8x32xi1>
    %525 = arith.select %524, %520, %490 : vector<8x32xi1>, vector<8x32xf32>
    %526 = vector.extract_strided_slice %278 {offsets = [7, 0, 0], sizes = [1, 8, 128], strides = [1, 1, 1]} : vector<8x8x128xf32> to vector<1x8x128xf32>
    %527 = vector.shape_cast %526 : vector<1x8x128xf32> to vector<8x128xf32>
    %528 = arith.truncf %520 : vector<8x32xf32> to vector<8x32xbf16>
    %cst_82 = arith.constant dense<0.000000e+00> : vector<8x128xf32>
    %529 = tpu.matmul %528, %272, %cst_82 {dimension_numbers = #tpu.dot_dimension_numbers<[1], [0], [0], [1], [0, 0, 1, 1], [], []>} : vector<8x32xbf16>, vector<32x128xbf16>, vector<8x128xf32> -> vector<8x128xf32>
    %530 = arith.addf %527, %529 : vector<8x128xf32>
    %531 = vector.extract_strided_slice %530 {offsets = [0, 0], sizes = [8, 32], strides = [1, 1]} : vector<8x128xf32> to vector<8x32xf32>
    %532 = arith.negf %531 : vector<8x32xf32>
    %533 = math.exp %532 : vector<8x32xf32>
    %cst_83 = arith.constant 1.000000e+00 : f32
    %534 = vector.broadcast %cst_83 : f32 to vector<8x32xf32>
    %535 = arith.addf %534, %533 : vector<8x32xf32>
    %536 = arith.divf %534, %535 : vector<8x32xf32>
    %537 = vector.extract_strided_slice %530 {offsets = [0, 32], sizes = [8, 32], strides = [1, 1]} : vector<8x128xf32> to vector<8x32xf32>
    %538 = arith.negf %537 : vector<8x32xf32>
    %539 = math.exp %538 : vector<8x32xf32>
    %cst_84 = arith.constant 1.000000e+00 : f32
    %540 = vector.broadcast %cst_84 : f32 to vector<8x32xf32>
    %541 = arith.addf %540, %539 : vector<8x32xf32>
    %542 = arith.divf %540, %541 : vector<8x32xf32>
    %543 = vector.extract_strided_slice %530 {offsets = [0, 64], sizes = [8, 32], strides = [1, 1]} : vector<8x128xf32> to vector<8x32xf32>
    %544 = math.tanh %543 : vector<8x32xf32>
    %545 = vector.extract_strided_slice %530 {offsets = [0, 96], sizes = [8, 32], strides = [1, 1]} : vector<8x128xf32> to vector<8x32xf32>
    %546 = arith.negf %545 : vector<8x32xf32>
    %547 = math.exp %546 : vector<8x32xf32>
    %cst_85 = arith.constant 1.000000e+00 : f32
    %548 = vector.broadcast %cst_85 : f32 to vector<8x32xf32>
    %549 = arith.addf %548, %547 : vector<8x32xf32>
    %550 = arith.divf %548, %549 : vector<8x32xf32>
    %551 = arith.mulf %542, %518 : vector<8x32xf32>
    %552 = arith.mulf %536, %544 : vector<8x32xf32>
    %553 = arith.addf %551, %552 : vector<8x32xf32>
    %554 = math.tanh %553 : vector<8x32xf32>
    %555 = arith.mulf %550, %554 : vector<8x32xf32>
    %c8_i32 = arith.constant 8 : i32
    %556 = vector.broadcast %c8_i32 : i32 to vector<8x1xi32>
    %557 = arith.cmpi eq, %1, %556 : vector<8x1xi32>
    %558 = vector.shape_cast %557 : vector<8x1xi1> to vector<8x1xi1>
    %559 = vector.broadcast %558 : vector<8x1xi1> to vector<8x32xi1>
    %560 = arith.select %559, %555, %525 : vector<8x32xi1>, vector<8x32xf32>
    %561 = arith.truncf %560 : vector<8x32xf32> to vector<8x32xbf16>
    %c0_86 = arith.constant 0 : index
    %c0_87 = arith.constant 0 : index
    %562 = vector.load %arg8[%c0_86, %c0_87] : memref<32x8xbf16, #tpu.memory_space<vmem>>, vector<32x8xbf16>
    %cst_88 = arith.constant dense<0.000000e+00> : vector<8x8xf32>
    %563 = tpu.matmul %561, %562, %cst_88 {dimension_numbers = #tpu.dot_dimension_numbers<[1], [0], [0], [1], [0, 0, 1, 1], [], []>} : vector<8x32xbf16>, vector<32x8xbf16>, vector<8x8xf32> -> vector<8x8xf32>
    %c0_89 = arith.constant 0 : index
    %c0_90 = arith.constant 0 : index
    %564 = vector.load %arg9[%c0_89, %c0_90] : memref<1x8xf32, #tpu.memory_space<vmem>>, vector<1x8xf32>
    %565 = vector.broadcast %564 : vector<1x8xf32> to vector<8x8xf32>
    %566 = arith.addf %563, %565 : vector<8x8xf32>
    %c0_91 = arith.constant 0 : index
    %c0_92 = arith.constant 0 : index
    %567 = vector.load %arg10[%c0_91, %c0_92] : memref<8x8xf32, #tpu.memory_space<vmem>>, vector<8x8xf32>
    tpu.vector_store %arg10[%c0_91, %c0_92], %566 {strides = array<i32>} : memref<8x8xf32, #tpu.memory_space<vmem>>, vector<8x8xf32>,
    return
  }
}

</mosaic_0001>

<llo_original>
// kernel: tpu_custom_call.1
$region0: #{tpu_custom_call.1}
  #allocation0 [shape = 'u32[]', space=smem, size = 0x4, offset = 0x4, fixed_abs, tag = 'smem constant byte address 0x4 - core index']
  #allocation1 [shape = 'u32[144,128]{1,0:T(1,128)}', space=vmem, size = 0x12000, scoped, tag = 'internal scratch']
  %s0 = inlined_call_operand.hbm [shape: f32[8,8,16], index: 0, kind: input, shape index: {}]
  %s1 = inlined_call_operand.vmem [shape: s32[8,1], index: 1, kind: input, shape index: {}]
  %s2 = inlined_call_operand.hbm [shape: bf16[16,128], index: 2, kind: input, shape index: {}]
  %s3 = inlined_call_operand.vmem [shape: bf16[32,128], index: 3, kind: input, shape index: {}]
  %s4 = inlined_call_operand.vmem [shape: f32[1,128], index: 4, kind: input, shape index: {}]
  %s5 = inlined_call_operand.vmem [shape: bf16[32,128], index: 5, kind: input, shape index: {}]
  %s6 = inlined_call_operand.vmem [shape: bf16[32,128], index: 6, kind: input, shape index: {}]
  %s7 = inlined_call_operand.vmem [shape: f32[1,128], index: 7, kind: input, shape index: {}]
  %s8 = inlined_call_operand.vmem [shape: bf16[32,8], index: 8, kind: input, shape index: {}]
  %s9 = inlined_call_operand.vmem [shape: f32[1,8], index: 9, kind: input, shape index: {}]
  %s10 = inlined_call_operand.hbm [shape: f32[8,8], index: 10, kind: output, shape index: {}]
  %s11 = sld [smem:[#allocation0]]
  $region58: #{tpu_custom_call.1} parent=0
    _
  %s13 = ssub.s32 1, %s11
  %s14 = scalar_select 0, %s13, %s11
  $region1: #{tpu_custom_call.1} parent=0
    #allocation2 [shape = 'u8[32768]{0}', space=vmem, size = 0x8000, scoped, tag = 'input window, operand 0, single buffered']
    #allocation3 [shape = 's32[1]{0}', space=sflag, size = 0x4, scoped, tag = 'scoped memory for tpu_custom_call.1']
    #allocation4 [shape = 's32[1]{0}', space=sflag, size = 0x4, scoped, tag = 'scoped memory for tpu_custom_call.1']
    #allocation5 [shape = 'u8[4096]{0}', space=vmem, size = 0x1000, scoped, tag = 'input window, operand 2, single buffered']
    #allocation6 [shape = 's32[1]{0}', space=sflag, size = 0x4, scoped, tag = 'scoped memory for tpu_custom_call.1']
    #allocation7 [shape = 'u8[4096]{0}', space=vmem, size = 0x1000, scoped, tag = 'output window, operand 0, single buffered']
    %15 = vsyncpa [#allocation3], 0
    %16 = vsyncpa [#allocation6], 0
    %17 = vsyncpa [#allocation4], 0
    // Predicated region
    $region2: #{tpu_custom_call.1} parent=1 // pred_check
      _
    $region3: #{tpu_custom_call.1} parent=1 // pred_check_branch
      %19 = sbr.rel (0) target = $region5
    $region4: #{tpu_custom_call.1} parent=1 // pred_region
      %s21 = ssub.s32 1024, 1024
      %22 = vsyncadd [#allocation3], %s21
      %s23 = sshll.u32 [#allocation2], 4
      %s24 = int_to_ptr.vmem [resolvable:$true] %s23
      %29 = dma.hbm_to_vmem [thread:$0]  %s0, 1024, %s24, [#allocation3], 128, 128, 8
    $region5: #{tpu_custom_call.1} parent=1 // pred_fallthru
      _
    // Predicated region
    $region6: #{tpu_custom_call.1} parent=1 // pred_check
      _
    $region7: #{tpu_custom_call.1} parent=1 // pred_check_branch
      %31 = sbr.rel (0) target = $region9
    $region8: #{tpu_custom_call.1} parent=1 // pred_region
      _
    $region9: #{tpu_custom_call.1} parent=1 // pred_fallthru
      _
    // Predicated region
    $region10: #{tpu_custom_call.1} parent=1 // pred_check
      _
    $region11: #{tpu_custom_call.1} parent=1 // pred_check_branch
      %33 = sbr.rel (0) target = $region13
    $region12: #{tpu_custom_call.1} parent=1 // pred_region
      %s35 = ssub.s32 128, 128
      %36 = vsyncadd [#allocation6], %s35
      %s37 = sshll.u32 [#allocation5], 4
      %s38 = int_to_ptr.vmem [resolvable:$true] %s37
      %43 = dma.hbm_to_vmem [thread:$0]  %s2, 128, %s38, [#allocation6], 64, 64, 4
    $region13: #{tpu_custom_call.1} parent=1 // pred_fallthru
      _
    // Predicated region
    $region14: #{tpu_custom_call.1} parent=1 // pred_check
      _
    $region15: #{tpu_custom_call.1} parent=1 // pred_check_branch
      %45 = sbr.rel (0) target = $region17
    $region16: #{tpu_custom_call.1} parent=1 // pred_region
      _
    $region17: #{tpu_custom_call.1} parent=1 // pred_fallthru
      _
    // Predicated region
    $region18: #{tpu_custom_call.1} parent=1 // pred_check
      _
    $region19: #{tpu_custom_call.1} parent=1 // pred_check_branch
      %47 = sbr.rel (0) target = $region21
    $region20: #{tpu_custom_call.1} parent=1 // pred_region
      _
    $region21: #{tpu_custom_call.1} parent=1 // pred_fallthru
      _
    // Predicated region
    $region22: #{tpu_custom_call.1} parent=1 // pred_check
      _
    $region23: #{tpu_custom_call.1} parent=1 // pred_check_branch
      %49 = sbr.rel (0) target = $region25
    $region24: #{tpu_custom_call.1} parent=1 // pred_region
      _
    $region25: #{tpu_custom_call.1} parent=1 // pred_fallthru
      _
    // Predicated region
    $region26: #{tpu_custom_call.1} parent=1 // pred_check
      _
    $region27: #{tpu_custom_call.1} parent=1 // pred_check_branch
      %51 = sbr.rel (0) target = $region29
    $region28: #{tpu_custom_call.1} parent=1 // pred_region
      _
    $region29: #{tpu_custom_call.1} parent=1 // pred_fallthru
      _
    // Predicated region
    $region30: #{tpu_custom_call.1} parent=1 // pred_check
      _
    $region31: #{tpu_custom_call.1} parent=1 // pred_check_branch
      %53 = sbr.rel (0) target = $region33
    $region32: #{tpu_custom_call.1} parent=1 // pred_region
      _
    $region33: #{tpu_custom_call.1} parent=1 // pred_fallthru
      _
    // Predicated region
    $region34: #{tpu_custom_call.1} parent=1 // pred_check
      _
    $region35: #{tpu_custom_call.1} parent=1 // pred_check_branch
      %55 = sbr.rel (0) target = $region37
    $region36: #{tpu_custom_call.1} parent=1 // pred_region
      _
    $region37: #{tpu_custom_call.1} parent=1 // pred_fallthru
      _
    // Predicated region
    $region38: #{tpu_custom_call.1} parent=1 // pred_check
      _
    $region39: #{tpu_custom_call.1} parent=1 // pred_check_branch
      %57 = sbr.rel (0) target = $region41
    $region40: #{tpu_custom_call.1} parent=1 // pred_region
      _
    $region41: #{tpu_custom_call.1} parent=1 // pred_fallthru
      _
    // Predicated region
    $region42: #{tpu_custom_call.1} parent=1 // pred_check
      _
    $region43: #{tpu_custom_call.1} parent=1 // pred_check_branch
      %59 = sbr.rel (0) target = $region45
    $region44: #{tpu_custom_call.1} parent=1 // pred_region
      %60 = dma.done [#allocation3], 1024
    $region45: #{tpu_custom_call.1} parent=1 // pred_fallthru
      _
    // Predicated region
    $region46: #{tpu_custom_call.1} parent=1 // pred_check
      _
    $region47: #{tpu_custom_call.1} parent=1 // pred_check_branch
      %62 = sbr.rel (0) target = $region49
    $region48: #{tpu_custom_call.1} parent=1 // pred_region
      %63 = dma.done [#allocation6], 128
    $region49: #{tpu_custom_call.1} parent=1 // pred_fallthru
      _
    %v65 = vld [vmem:[#allocation2] sm:$0xff]
    %v66 = vld [vmem:[#allocation2 + $0x8] sm:$0xff]
    %v67 = vld [vmem:[#allocation2 + $0x10] sm:$0xff]
    %v68 = vld [vmem:[#allocation2 + $0x18] sm:$0xff]
    %v69 = vld [vmem:[#allocation2 + $0x20] sm:$0xff]
    %v70 = vld [vmem:[#allocation2 + $0x28] sm:$0xff]
    %v71 = vld [vmem:[#allocation2 + $0x30] sm:$0xff]
    %v72 = vld [vmem:[#allocation2 + $0x38] sm:$0xff]
    %v73 = vld [vmem:[%s1] sm:$0xff]
    %v82 = vrot.slane %v66, 7
    %vm83 = vcmask 1041409
    %v84 = vsel %vm83, %v82, %v65
    %v85 = vrot.slane %v67, 6
    %vm86 = vcmask 1042434
    %v87 = vsel %vm86, %v85, %v84
    %v88 = vrot.slane %v68, 5
    %vm89 = vcmask 1043459
    %v90 = vsel %vm89, %v88, %v87
    %v91 = vrot.slane %v69, 4
    %vm92 = vcmask 1044484
    %v93 = vsel %vm92, %v91, %v90
    %v94 = vrot.slane %v70, 3
    %vm95 = vcmask 1045509
    %v96 = vsel %vm95, %v94, %v93
    %v97 = vrot.slane %v71, 2
    %vm98 = vcmask 1046534
    %v99 = vsel %vm98, %v97, %v96
    %v100 = vrot.slane %v72, 1
    %vm101 = vcmask 1047559
    %v102 = vsel %vm101, %v100, %v99
    %v104 = vrot.slane %v65, 1
    %v105 = vsel %vm83, %v66, %v104
    %v106 = vrot.slane %v67, 7
    %v107 = vsel %vm86, %v106, %v105
    %v108 = vrot.slane %v68, 6
    %v109 = vsel %vm89, %v108, %v107
    %v110 = vrot.slane %v69, 5
    %v111 = vsel %vm92, %v110, %v109
    %v112 = vrot.slane %v70, 4
    %v113 = vsel %vm95, %v112, %v111
    %v114 = vrot.slane %v71, 3
    %v115 = vsel %vm98, %v114, %v113
    %v116 = vrot.slane %v72, 2
    %v117 = vsel %vm101, %v116, %v115
    %v119 = vrot.slane %v65, 2
    %v120 = vrot.slane %v66, 1
    %v121 = vsel %vm83, %v120, %v119
    %v122 = vsel %vm86, %v67, %v121
    %v123 = vrot.slane %v68, 7
    %v124 = vsel %vm89, %v123, %v122
    %v125 = vrot.slane %v69, 6
    %v126 = vsel %vm92, %v125, %v124
    %v127 = vrot.slane %v70, 5
    %v128 = vsel %vm95, %v127, %v126
    %v129 = vrot.slane %v71, 4
    %v130 = vsel %vm98, %v129, %v128
    %v131 = vrot.slane %v72, 3
    %v132 = vsel %vm101, %v131, %v130
    %v134 = vrot.slane %v65, 3
    %v135 = vrot.slane %v66, 2
    %v136 = vsel %vm83, %v135, %v134
    %v137 = vrot.slane %v67, 1
    %v138 = vsel %vm86, %v137, %v136
    %v139 = vsel %vm89, %v68, %v138
    %v140 = vrot.slane %v69, 7
    %v141 = vsel %vm92, %v140, %v139
    %v142 = vrot.slane %v70, 6
    %v143 = vsel %vm95, %v142, %v141
    %v144 = vrot.slane %v71, 5
    %v145 = vsel %vm98, %v144, %v143
    %v146 = vrot.slane %v72, 4
    %v147 = vsel %vm101, %v146, %v145
    %v149 = vrot.slane %v65, 4
    %v150 = vrot.slane %v66, 3
    %v151 = vsel %vm83, %v150, %v149
    %v152 = vrot.slane %v67, 2
    %v153 = vsel %vm86, %v152, %v151
    %v154 = vrot.slane %v68, 1
    %v155 = vsel %vm89, %v154, %v153
    %v156 = vsel %vm92, %v69, %v155
    %v157 = vrot.slane %v70, 7
    %v158 = vsel %vm95, %v157, %v156
    %v159 = vrot.slane %v71, 6
    %v160 = vsel %vm98, %v159, %v158
    %v161 = vrot.slane %v72, 5
    %v162 = vsel %vm101, %v161, %v160
    %v164 = vrot.slane %v65, 5
    %v165 = vrot.slane %v66, 4
    %v166 = vsel %vm83, %v165, %v164
    %v167 = vrot.slane %v67, 3
    %v168 = vsel %vm86, %v167, %v166
    %v169 = vrot.slane %v68, 2
    %v170 = vsel %vm89, %v169, %v168
    %v171 = vrot.slane %v69, 1
    %v172 = vsel %vm92, %v171, %v170
    %v173 = vsel %vm95, %v70, %v172
    %v174 = vrot.slane %v71, 7
    %v175 = vsel %vm98, %v174, %v173
    %v176 = vrot.slane %v72, 6
    %v177 = vsel %vm101, %v176, %v175
    %v179 = vrot.slane %v65, 6
    %v180 = vrot.slane %v66, 5
    %v181 = vsel %vm83, %v180, %v179
    %v182 = vrot.slane %v67, 4
    %v183 = vsel %vm86, %v182, %v181
    %v184 = vrot.slane %v68, 3
    %v185 = vsel %vm89, %v184, %v183
    %v186 = vrot.slane %v69, 2
    %v187 = vsel %vm92, %v186, %v185
    %v188 = vrot.slane %v70, 1
    %v189 = vsel %vm95, %v188, %v187
    %v190 = vsel %vm98, %v71, %v189
    %v191 = vrot.slane %v72, 7
    %v192 = vsel %vm101, %v191, %v190
    %v194 = vrot.slane %v65, 7
    %v195 = vrot.slane %v66, 6
    %v196 = vsel %vm83, %v195, %v194
    %v197 = vrot.slane %v67, 5
    %v198 = vsel %vm86, %v197, %v196
    %v199 = vrot.slane %v68, 4
    %v200 = vsel %vm89, %v199, %v198
    %v201 = vrot.slane %v69, 3
    %v202 = vsel %vm92, %v201, %v200
    %v203 = vrot.slane %v70, 2
    %v204 = vsel %vm95, %v203, %v202
    %v205 = vrot.slane %v71, 1
    %v206 = vsel %vm98, %v205, %v204
    %v207 = vsel %vm101, %v72, %v206
    %v209 = vld [vmem:[#allocation5] sm:$0xf]
    %v210 = vld [vmem:[#allocation5 + $0x4] sm:$0xf]
    %v211 = vld [vmem:[%s3] sm:$0xf]
    %v212 = vld [vmem:[%s3 + $0x4] sm:$0xf]
    %v213 = vld [vmem:[%s3 + $0x8] sm:$0xf]
    %v214 = vld [vmem:[%s3 + $0xc] sm:$0xf]
    %v215 = vld [vmem:[%s4] sm:$0x1]
    %v216 = vpack.c.bf16 %v117, %v102
    %v217 = vpack.c.bf16 %v147, %v132
    %v218 = vpack.c.bf16 %v177, %v162
    %v219 = vpack.c.bf16 %v207, %v192
    %v221 = vlaneseq
    %v222 = vshrl.u32 %v221, 7
    %v223 = vsub.s32 0, %v222
    %v224 = vrot.slane %v215, %v223
    %v228 = vunpack.c.l.b16 %v209
    %v229 = vunpack.c.l.b16 %v210
    %v230 = vpack.c.b16 %v229, %v228
    %vm232 = vcmask 130048
    %v234 = vsel %vm232, %v216, 0
    %v237 = vsel %vm232, %v217, 0
    %v240 = vsel %vm232, %v218, 0
    %v243 = vsel %vm232, %v219, 0
    %245 = vmatprep.subr.bf16.mxu0 0
    %246 = vmatpush1.bf16.msra.mxu0 %v230
    %247 = vmatprep.subr.bf16.mxu0 0
    %248 = vmatpush1.bf16.msra.mxu0 0
    %249 = vmatprep.subr.bf16.mxu0 0
    %250 = vmatpush1.bf16.msra.mxu0 0
    %251 = vmatprep.subr.bf16.mxu0 0
    %252 = vmatpush1.bf16.msra.mxu0 0
    %253 = vmatprep.subr.bf16.mxu0 0
    %254 = vmatpush1.bf16.msra.mxu0 0
    %255 = vmatprep.subr.bf16.mxu0 0
    %256 = vmatpush1.bf16.msra.mxu0 0
    %257 = vmatprep.subr.bf16.mxu0 0
    %258 = vmatpush1.bf16.msra.mxu0 0
    %259 = vmatprep.subr.bf16.mxu0 0
    %260 = vmatpush1.bf16.msra.mxu0 0
    %261 = vmatprep.subr.bf16.mxu0 0
    %262 = vmatpush1.bf16.msra.mxu0 0
    %263 = vmatprep.subr.bf16.mxu0 0
    %264 = vmatpush1.bf16.msra.mxu0 0
    %265 = vmatprep.subr.bf16.mxu0 0
    %266 = vmatpush1.bf16.msra.mxu0 0
    %267 = vmatprep.subr.bf16.mxu0 0
    %268 = vmatpush1.bf16.msra.mxu0 0
    %269 = vmatprep.subr.bf16.mxu0 0
    %270 = vmatpush1.bf16.msra.mxu0 0
    %271 = vmatprep.subr.bf16.mxu0 0
    %272 = vmatpush1.bf16.msra.mxu0 0
    %273 = vmatprep.subr.bf16.mxu0 0
    %274 = vmatpush1.bf16.msra.mxu0 0
    %275 = vmatprep.subr.bf16.mxu0 0
    %276 = vmatpush1.bf16.msra.mxu0 0
    %277 = vmatprep.mubr.bf16.mxu0 0
    %278 = vmatmul.mubr.bf16.gmra.mrb[0].mxu0 %v234
    %v279 = vpop.f32.mrb[0].mxu0
    %v280 = vadd.f32 %v224, %v279
    %v281 = vpop.f32.mrb[0].mxu0
    %v282 = vpop.f32.mrb[0].mxu0
    %v283 = vadd.f32 %v224, %v282
    %v284 = vpop.f32.mrb[0].mxu0
    %285 = vmatprep.mubr.bf16.mxu0 0
    %286 = vmatmul.mubr.bf16.gmra.mrb[0].mxu0 %v237
    %v287 = vpop.f32.mrb[0].mxu0
    %v288 = vadd.f32 %v224, %v287
    %v289 = vpop.f32.mrb[0].mxu0
    %v290 = vpop.f32.mrb[0].mxu0
    %v291 = vadd.f32 %v224, %v290
    %v292 = vpop.f32.mrb[0].mxu0
    %293 = vmatprep.mubr.bf16.mxu0 0
    %294 = vmatmul.mubr.bf16.gmra.mrb[0].mxu0 %v240
    %v295 = vpop.f32.mrb[0].mxu0
    %v296 = vadd.f32 %v224, %v295
    %v297 = vpop.f32.mrb[0].mxu0
    %v298 = vpop.f32.mrb[0].mxu0
    %v299 = vadd.f32 %v224, %v298
    %v300 = vpop.f32.mrb[0].mxu0
    %301 = vmatprep.mubr.bf16.mxu0 0
    %302 = vmatmul.mubr.bf16.gmra.mrb[0].mxu0 %v243
    %v303 = vpop.f32.mrb[0].mxu0
    %v304 = vadd.f32 %v224, %v303
    %v305 = vpop.f32.mrb[0].mxu0
    %v306 = vpop.f32.mrb[0].mxu0
    %v307 = vadd.f32 %v224, %v306
    %v308 = vpop.f32.mrb[0].mxu0
    %309 = vdwg.mxu0
    %v314 = vunpack.c.l.b16 %v211
    %v315 = vunpack.c.l.b16 %v212
    %v316 = vunpack.c.l.b16 %v213
    %v317 = vunpack.c.l.b16 %v214
    %v318 = vpack.c.b16 %v315, %v314
    %v319 = vpack.c.b16 %v317, %v316
    %vm322 = vcmask 261120
    %v324 = vsel %vm322, 0, 0
    %326 = vmatprep.subr.bf16.mxu0 0
    %327 = vmatpush1.bf16.msra.mxu0 %v318
    %328 = vmatprep.subr.bf16.mxu0 0
    %329 = vmatpush1.bf16.msra.mxu0 %v319
    %330 = vmatprep.subr.bf16.mxu0 0
    %331 = vmatpush1.bf16.msra.mxu0 0
    %332 = vmatprep.subr.bf16.mxu0 0
    %333 = vmatpush1.bf16.msra.mxu0 0
    %334 = vmatprep.subr.bf16.mxu0 0
    %335 = vmatpush1.bf16.msra.mxu0 0
    %336 = vmatprep.subr.bf16.mxu0 0
    %337 = vmatpush1.bf16.msra.mxu0 0
    %338 = vmatprep.subr.bf16.mxu0 0
    %339 = vmatpush1.bf16.msra.mxu0 0
    %340 = vmatprep.subr.bf16.mxu0 0
    %341 = vmatpush1.bf16.msra.mxu0 0
    %342 = vmatprep.subr.bf16.mxu0 0
    %343 = vmatpush1.bf16.msra.mxu0 0
    %344 = vmatprep.subr.bf16.mxu0 0
    %345 = vmatpush1.bf16.msra.mxu0 0
    %346 = vmatprep.subr.bf16.mxu0 0
    %347 = vmatpush1.bf16.msra.mxu0 0
    %348 = vmatprep.subr.bf16.mxu0 0
    %349 = vmatpush1.bf16.msra.mxu0 0
    %350 = vmatprep.subr.bf16.mxu0 0
    %351 = vmatpush1.bf16.msra.mxu0 0
    %352 = vmatprep.subr.bf16.mxu0 0
    %353 = vmatpush1.bf16.msra.mxu0 0
    %354 = vmatprep.subr.bf16.mxu0 0
    %355 = vmatpush1.bf16.msra.mxu0 0
    %356 = vmatprep.subr.bf16.mxu0 0
    %357 = vmatpush1.bf16.msra.mxu0 0
    %358 = vmatprep.mubr.bf16.mxu0 0
    %359 = vmatmul.mubr.bf16.gmra.mrb[0].mxu0 %v324
    %v360 = vpop.f32.mrb[0].mxu0
    %v361 = vadd.f32 0.0, %v360
    %v362 = vpop.f32.mrb[0].mxu0
    %v363 = vpop.f32.mrb[0].mxu0
    %v364 = vpop.f32.mrb[0].mxu0
    %365 = vdwg.mxu0
    %v366 = vadd.f32 %v280, %v361
    %v367 = vxor.u32 %v366, 2147483648
    %v368 = vmul.f32 %v367, 1.442695
    %v369 = vpow.pop %v368
    %v370 = vadd.f32 %v369, 1.0
    %v371 = vrcp.pop %v370
    %v372 = vmul.f32 1.0, %v371
    %v373 = vtanh.pop %v366
    %v374 = vmul.f32 %v372, 0.0
    %376 = vrot.lane.b32.xlu0 %v373, 64
    %v377 = vpop.permute.xlu0 %376
    %v379 = vmul.f32 %v372, %v377
    %381 = vrot.lane.b32.xlu0 %v379, 32
    %v382 = vpop.permute.xlu0 %381
    %v384 = vadd.f32 %v374, %v382
    %v385 = vtanh.pop %v384
    %387 = vrot.lane.b32.xlu0 %v385, 64
    %v388 = vpop.permute.xlu0 %387
    %v390 = vmul.f32 %v372, %v388
    %v391 = vpack.c.bf16 %v390, %v390
    %393 = vrot.lane.b32.xlu0 %v391, 32
    %v394 = vpop.permute.xlu0 %393
    %v396 = vsel %vm322, %v394, 0
    %398 = vmatprep.subr.bf16.mxu0 0
    %399 = vmatpush1.bf16.msra.mxu0 %v318
    %400 = vmatprep.subr.bf16.mxu0 0
    %401 = vmatpush1.bf16.msra.mxu0 %v319
    %402 = vmatprep.subr.bf16.mxu0 0
    %403 = vmatpush1.bf16.msra.mxu0 0
    %404 = vmatprep.subr.bf16.mxu0 0
    %405 = vmatpush1.bf16.msra.mxu0 0
    %406 = vmatprep.subr.bf16.mxu0 0
    %407 = vmatpush1.bf16.msra.mxu0 0
    %408 = vmatprep.subr.bf16.mxu0 0
    %409 = vmatpush1.bf16.msra.mxu0 0
    %410 = vmatprep.subr.bf16.mxu0 0
    %411 = vmatpush1.bf16.msra.mxu0 0
    %412 = vmatprep.subr.bf16.mxu0 0
    %413 = vmatpush1.bf16.msra.mxu0 0
    %414 = vmatprep.subr.bf16.mxu0 0
    %415 = vmatpush1.bf16.msra.mxu0 0
    %416 = vmatprep.subr.bf16.mxu0 0
    %417 = vmatpush1.bf16.msra.mxu0 0
    %418 = vmatprep.subr.bf16.mxu0 0
    %419 = vmatpush1.bf16.msra.mxu0 0
    %420 = vmatprep.subr.bf16.mxu0 0
    %421 = vmatpush1.bf16.msra.mxu0 0
    %422 = vmatprep.subr.bf16.mxu0 0
    %423 = vmatpush1.bf16.msra.mxu0 0
    %424 = vmatprep.subr.bf16.mxu0 0
    %425 = vmatpush1.bf16.msra.mxu0 0
    %426 = vmatprep.subr.bf16.mxu0 0
    %427 = vmatpush1.bf16.msra.mxu0 0
    %428 = vmatprep.subr.bf16.mxu0 0
    %429 = vmatpush1.bf16.msra.mxu0 0
    %430 = vmatprep.mubr.bf16.mxu0 0
    %431 = vmatmul.mubr.bf16.gmra.mrb[0].mxu0 %v396
    %v432 = vpop.f32.mrb[0].mxu0
    %v433 = vadd.f32 0.0, %v432
    %v434 = vpop.f32.mrb[0].mxu0
    %v435 = vpop.f32.mrb[0].mxu0
    %v436 = vpop.f32.mrb[0].mxu0
    %437 = vdwg.mxu0
    %v438 = vadd.f32 %v283, %v433
    %v439 = vxor.u32 %v438, 2147483648
    %v440 = vmul.f32 %v439, 1.442695
    %v441 = vpow.pop %v440
    %v442 = vadd.f32 %v441, 1.0
    %v443 = vrcp.pop %v442
    %v444 = vmul.f32 1.0, %v443
    %v445 = vtanh.pop %v438
    %v446 = vmul.f32 %v444, %v384
    %448 = vrot.lane.b32.xlu0 %v445, 64
    %v449 = vpop.permute.xlu0 %448
    %v451 = vmul.f32 %v444, %v449
    %453 = vrot.lane.b32.xlu0 %v451, 32
    %v454 = vpop.permute.xlu0 %453
    %v456 = vadd.f32 %v446, %v454
    %v457 = vtanh.pop %v456
    %459 = vrot.lane.b32.xlu0 %v457, 64
    %v460 = vpop.permute.xlu0 %459
    %v462 = vmul.f32 %v444, %v460
    %v463 = vpack.c.bf16 %v462, %v462
    %465 = vrot.lane.b32.xlu0 %v463, 32
    %v466 = vpop.permute.xlu0 %465
    %v468 = vsel %vm322, %v466, 0
    %470 = vmatprep.subr.bf16.mxu0 0
    %471 = vmatpush1.bf16.msra.mxu0 %v318
    %472 = vmatprep.subr.bf16.mxu0 0
    %473 = vmatpush1.bf16.msra.mxu0 %v319
    %474 = vmatprep.subr.bf16.mxu0 0
    %475 = vmatpush1.bf16.msra.mxu0 0
    %476 = vmatprep.subr.bf16.mxu0 0
    %477 = vmatpush1.bf16.msra.mxu0 0
    %478 = vmatprep.subr.bf16.mxu0 0
    %479 = vmatpush1.bf16.msra.mxu0 0
    %480 = vmatprep.subr.bf16.mxu0 0
    %481 = vmatpush1.bf16.msra.mxu0 0
    %482 = vmatprep.subr.bf16.mxu0 0
    %483 = vmatpush1.bf16.msra.mxu0 0
    %484 = vmatprep.subr.bf16.mxu0 0
    %485 = vmatpush1.bf16.msra.mxu0 0
    %486 = vmatprep.subr.bf16.mxu0 0
    %487 = vmatpush1.bf16.msra.mxu0 0
    %488 = vmatprep.subr.bf16.mxu0 0
    %489 = vmatpush1.bf16.msra.mxu0 0
    %490 = vmatprep.subr.bf16.mxu0 0
    %491 = vmatpush1.bf16.msra.mxu0 0
    %492 = vmatprep.subr.bf16.mxu0 0
    %493 = vmatpush1.bf16.msra.mxu0 0
    %494 = vmatprep.subr.bf16.mxu0 0
    %495 = vmatpush1.bf16.msra.mxu0 0
    %496 = vmatprep.subr.bf16.mxu0 0
    %497 = vmatpush1.bf16.msra.mxu0 0
    %498 = vmatprep.subr.bf16.mxu0 0
    %499 = vmatpush1.bf16.msra.mxu0 0
    %500 = vmatprep.subr.bf16.mxu0 0
    %501 = vmatpush1.bf16.msra.mxu0 0
    %502 = vmatprep.mubr.bf16.mxu0 0
    %503 = vmatmul.mubr.bf16.gmra.mrb[0].mxu0 %v468
    %v504 = vpop.f32.mrb[0].mxu0
    %v505 = vadd.f32 0.0, %v504
    %v506 = vpop.f32.mrb[0].mxu0
    %v507 = vpop.f32.mrb[0].mxu0
    %v508 = vpop.f32.mrb[0].mxu0
    %509 = vdwg.mxu0
    %v510 = vadd.f32 %v288, %v505
    %v511 = vxor.u32 %v510, 2147483648
    %v512 = vmul.f32 %v511, 1.442695
    %v513 = vpow.pop %v512
    %v514 = vadd.f32 %v513, 1.0
    %v515 = vrcp.pop %v514
    %v516 = vmul.f32 1.0, %v515
    %v517 = vtanh.pop %v510
    %v518 = vmul.f32 %v516, %v456
    %520 = vrot.lane.b32.xlu0 %v517, 64
    %v521 = vpop.permute.xlu0 %520
    %v523 = vmul.f32 %v516, %v521
    %525 = vrot.lane.b32.xlu0 %v523, 32
    %v526 = vpop.permute.xlu0 %525
    %v528 = vadd.f32 %v518, %v526
    %v529 = vtanh.pop %v528
    %531 = vrot.lane.b32.xlu0 %v529, 64
    %v532 = vpop.permute.xlu0 %531
    %v534 = vmul.f32 %v516, %v532
    %v535 = vpack.c.bf16 %v534, %v534
    %537 = vrot.lane.b32.xlu0 %v535, 32
    %v538 = vpop.permute.xlu0 %537
    %v540 = vsel %vm322, %v538, 0
    %542 = vmatprep.subr.bf16.mxu0 0
    %543 = vmatpush1.bf16.msra.mxu0 %v318
    %544 = vmatprep.subr.bf16.mxu0 0
    %545 = vmatpush1.bf16.msra.mxu0 %v319
    %546 = vmatprep.subr.bf16.mxu0 0
    %547 = vmatpush1.bf16.msra.mxu0 0
    %548 = vmatprep.subr.bf16.mxu0 0
    %549 = vmatpush1.bf16.msra.mxu0 0
    %550 = vmatprep.subr.bf16.mxu0 0
    %551 = vmatpush1.bf16.msra.mxu0 0
    %552 = vmatprep.subr.bf16.mxu0 0
    %553 = vmatpush1.bf16.msra.mxu0 0
    %554 = vmatprep.subr.bf16.mxu0 0
    %555 = vmatpush1.bf16.msra.mxu0 0
    %556 = vmatprep.subr.bf16.mxu0 0
    %557 = vmatpush1.bf16.msra.mxu0 0
    %558 = vmatprep.subr.bf16.mxu0 0
    %559 = vmatpush1.bf16.msra.mxu0 0
    %560 = vmatprep.subr.bf16.mxu0 0
    %561 = vmatpush1.bf16.msra.mxu0 0
    %562 = vmatprep.subr.bf16.mxu0 0
    %563 = vmatpush1.bf16.msra.mxu0 0
    %564 = vmatprep.subr.bf16.mxu0 0
    %565 = vmatpush1.bf16.msra.mxu0 0
    %566 = vmatprep.subr.bf16.mxu0 0
    %567 = vmatpush1.bf16.msra.mxu0 0
    %568 = vmatprep.subr.bf16.mxu0 0
    %569 = vmatpush1.bf16.msra.mxu0 0
    %570 = vmatprep.subr.bf16.mxu0 0
    %571 = vmatpush1.bf16.msra.mxu0 0
    %572 = vmatprep.subr.bf16.mxu0 0
    %573 = vmatpush1.bf16.msra.mxu0 0
    %574 = vmatprep.mubr.bf16.mxu0 0
    %575 = vmatmul.mubr.bf16.gmra.mrb[0].mxu0 %v540
    %v576 = vpop.f32.mrb[0].mxu0
    %v577 = vadd.f32 0.0, %v576
    %v578 = vpop.f32.mrb[0].mxu0
    %v579 = vpop.f32.mrb[0].mxu0
    %v580 = vpop.f32.mrb[0].mxu0
    %581 = vdwg.mxu0
    %v582 = vadd.f32 %v291, %v577
    %v583 = vxor.u32 %v582, 2147483648
    %v584 = vmul.f32 %v583, 1.442695
    %v585 = vpow.pop %v584
    %v586 = vadd.f32 %v585, 1.0
    %v587 = vrcp.pop %v586
    %v588 = vmul.f32 1.0, %v587
    %v589 = vtanh.pop %v582
    %v590 = vmul.f32 %v588, %v528
    %592 = vrot.lane.b32.xlu0 %v589, 64
    %v593 = vpop.permute.xlu0 %592
    %v595 = vmul.f32 %v588, %v593
    %597 = vrot.lane.b32.xlu0 %v595, 32
    %v598 = vpop.permute.xlu0 %597
    %v600 = vadd.f32 %v590, %v598
    %v601 = vtanh.pop %v600
    %603 = vrot.lane.b32.xlu0 %v601, 64
    %v604 = vpop.permute.xlu0 %603
    %v606 = vmul.f32 %v588, %v604
    %v607 = vpack.c.bf16 %v606, %v606
    %609 = vrot.lane.b32.xlu0 %v607, 32
    %v610 = vpop.permute.xlu0 %609
    %v612 = vsel %vm322, %v610, 0
    %614 = vmatprep.subr.bf16.mxu0 0
    %615 = vmatpush1.bf16.msra.mxu0 %v318
    %616 = vmatprep.subr.bf16.mxu0 0
    %617 = vmatpush1.bf16.msra.mxu0 %v319
    %618 = vmatprep.subr.bf16.mxu0 0
    %619 = vmatpush1.bf16.msra.mxu0 0
    %620 = vmatprep.subr.bf16.mxu0 0
    %621 = vmatpush1.bf16.msra.mxu0 0
    %622 = vmatprep.subr.bf16.mxu0 0
    %623 = vmatpush1.bf16.msra.mxu0 0
    %624 = vmatprep.subr.bf16.mxu0 0
    %625 = vmatpush1.bf16.msra.mxu0 0
    %626 = vmatprep.subr.bf16.mxu0 0
    %627 = vmatpush1.bf16.msra.mxu0 0
    %628 = vmatprep.subr.bf16.mxu0 0
    %629 = vmatpush1.bf16.msra.mxu0 0
    %630 = vmatprep.subr.bf16.mxu0 0
    %631 = vmatpush1.bf16.msra.mxu0 0
    %632 = vmatprep.subr.bf16.mxu0 0
    %633 = vmatpush1.bf16.msra.mxu0 0
    %634 = vmatprep.subr.bf16.mxu0 0
    %635 = vmatpush1.bf16.msra.mxu0 0
    %636 = vmatprep.subr.bf16.mxu0 0
    %637 = vmatpush1.bf16.msra.mxu0 0
    %638 = vmatprep.subr.bf16.mxu0 0
    %639 = vmatpush1.bf16.msra.mxu0 0
    %640 = vmatprep.subr.bf16.mxu0 0
    %641 = vmatpush1.bf16.msra.mxu0 0
    %642 = vmatprep.subr.bf16.mxu0 0
    %643 = vmatpush1.bf16.msra.mxu0 0
    %644 = vmatprep.subr.bf16.mxu0 0
    %645 = vmatpush1.bf16.msra.mxu0 0
    %646 = vmatprep.mubr.bf16.mxu0 0
    %647 = vmatmul.mubr.bf16.gmra.mrb[0].mxu0 %v612
    %v648 = vpop.f32.mrb[0].mxu0
    %v649 = vadd.f32 0.0, %v648
    %v650 = vpop.f32.mrb[0].mxu0
    %v651 = vpop.f32.mrb[0].mxu0
    %v652 = vpop.f32.mrb[0].mxu0
    %653 = vdwg.mxu0
    %v654 = vadd.f32 %v296, %v649
    %v655 = vxor.u32 %v654, 2147483648
    %v656 = vmul.f32 %v655, 1.442695
    %v657 = vpow.pop %v656
    %v658 = vadd.f32 %v657, 1.0
    %v659 = vrcp.pop %v658
    %v660 = vmul.f32 1.0, %v659
    %v661 = vtanh.pop %v654
    %v662 = vmul.f32 %v660, %v600
    %664 = vrot.lane.b32.xlu0 %v661, 64
    %v665 = vpop.permute.xlu0 %664
    %v667 = vmul.f32 %v660, %v665
    %669 = vrot.lane.b32.xlu0 %v667, 32
    %v670 = vpop.permute.xlu0 %669
    %v672 = vadd.f32 %v662, %v670
    %v673 = vtanh.pop %v672
    %675 = vrot.lane.b32.xlu0 %v673, 64
    %v676 = vpop.permute.xlu0 %675
    %v678 = vmul.f32 %v660, %v676
    %v679 = vpack.c.bf16 %v678, %v678
    %681 = vrot.lane.b32.xlu0 %v679, 32
    %v682 = vpop.permute.xlu0 %681
    %v684 = vsel %vm322, %v682, 0
    %686 = vmatprep.subr.bf16.mxu0 0
    %687 = vmatpush1.bf16.msra.mxu0 %v318
    %688 = vmatprep.subr.bf16.mxu0 0
    %689 = vmatpush1.bf16.msra.mxu0 %v319
    %690 = vmatprep.subr.bf16.mxu0 0
    %691 = vmatpush1.bf16.msra.mxu0 0
    %692 = vmatprep.subr.bf16.mxu0 0
    %693 = vmatpush1.bf16.msra.mxu0 0
    %694 = vmatprep.subr.bf16.mxu0 0
    %695 = vmatpush1.bf16.msra.mxu0 0
    %696 = vmatprep.subr.bf16.mxu0 0
    %697 = vmatpush1.bf16.msra.mxu0 0
    %698 = vmatprep.subr.bf16.mxu0 0
    %699 = vmatpush1.bf16.msra.mxu0 0
    %700 = vmatprep.subr.bf16.mxu0 0
    %701 = vmatpush1.bf16.msra.mxu0 0
    %702 = vmatprep.subr.bf16.mxu0 0
    %703 = vmatpush1.bf16.msra.mxu0 0
    %704 = vmatprep.subr.bf16.mxu0 0
    %705 = vmatpush1.bf16.msra.mxu0 0
    %706 = vmatprep.subr.bf16.mxu0 0
    %707 = vmatpush1.bf16.msra.mxu0 0
    %708 = vmatprep.subr.bf16.mxu0 0
    %709 = vmatpush1.bf16.msra.mxu0 0
    %710 = vmatprep.subr.bf16.mxu0 0
    %711 = vmatpush1.bf16.msra.mxu0 0
    %712 = vmatprep.subr.bf16.mxu0 0
    %713 = vmatpush1.bf16.msra.mxu0 0
    %714 = vmatprep.subr.bf16.mxu0 0
    %715 = vmatpush1.bf16.msra.mxu0 0
    %716 = vmatprep.subr.bf16.mxu0 0
    %717 = vmatpush1.bf16.msra.mxu0 0
    %718 = vmatprep.mubr.bf16.mxu0 0
    %719 = vmatmul.mubr.bf16.gmra.mrb[0].mxu0 %v684
    %v720 = vpop.f32.mrb[0].mxu0
    %v721 = vadd.f32 0.0, %v720
    %v722 = vpop.f32.mrb[0].mxu0
    %v723 = vpop.f32.mrb[0].mxu0
    %v724 = vpop.f32.mrb[0].mxu0
    %725 = vdwg.mxu0
    %v726 = vadd.f32 %v299, %v721
    %v727 = vxor.u32 %v726, 2147483648
    %v728 = vmul.f32 %v727, 1.442695
    %v729 = vpow.pop %v728
    %v730 = vadd.f32 %v729, 1.0
    %v731 = vrcp.pop %v730
    %v732 = vmul.f32 1.0, %v731
    %v733 = vtanh.pop %v726
    %v734 = vmul.f32 %v732, %v672
    %736 = vrot.lane.b32.xlu0 %v733, 64
    %v737 = vpop.permute.xlu0 %736
    %v739 = vmul.f32 %v732, %v737
    %741 = vrot.lane.b32.xlu0 %v739, 32
    %v742 = vpop.permute.xlu0 %741
    %v744 = vadd.f32 %v734, %v742
    %v745 = vtanh.pop %v744
    %747 = vrot.lane.b32.xlu0 %v745, 64
    %v748 = vpop.permute.xlu0 %747
    %v750 = vmul.f32 %v732, %v748
    %v751 = vpack.c.bf16 %v750, %v750
    %753 = vrot.lane.b32.xlu0 %v751, 32
    %v754 = vpop.permute.xlu0 %753
    %v756 = vsel %vm322, %v754, 0
    %758 = vmatprep.subr.bf16.mxu0 0
    %759 = vmatpush1.bf16.msra.mxu0 %v318
    %760 = vmatprep.subr.bf16.mxu0 0
    %761 = vmatpush1.bf16.msra.mxu0 %v319
    %762 = vmatprep.subr.bf16.mxu0 0
    %763 = vmatpush1.bf16.msra.mxu0 0
    %764 = vmatprep.subr.bf16.mxu0 0
    %765 = vmatpush1.bf16.msra.mxu0 0
    %766 = vmatprep.subr.bf16.mxu0 0
    %767 = vmatpush1.bf16.msra.mxu0 0
    %768 = vmatprep.subr.bf16.mxu0 0
    %769 = vmatpush1.bf16.msra.mxu0 0
    %770 = vmatprep.subr.bf16.mxu0 0
    %771 = vmatpush1.bf16.msra.mxu0 0
    %772 = vmatprep.subr.bf16.mxu0 0
    %773 = vmatpush1.bf16.msra.mxu0 0
    %774 = vmatprep.subr.bf16.mxu0 0
    %775 = vmatpush1.bf16.msra.mxu0 0
    %776 = vmatprep.subr.bf16.mxu0 0
    %777 = vmatpush1.bf16.msra.mxu0 0
    %778 = vmatprep.subr.bf16.mxu0 0
    %779 = vmatpush1.bf16.msra.mxu0 0
    %780 = vmatprep.subr.bf16.mxu0 0
    %781 = vmatpush1.bf16.msra.mxu0 0
    %782 = vmatprep.subr.bf16.mxu0 0
    %783 = vmatpush1.bf16.msra.mxu0 0
    %784 = vmatprep.subr.bf16.mxu0 0
    %785 = vmatpush1.bf16.msra.mxu0 0
    %786 = vmatprep.subr.bf16.mxu0 0
    %787 = vmatpush1.bf16.msra.mxu0 0
    %788 = vmatprep.subr.bf16.mxu0 0
    %789 = vmatpush1.bf16.msra.mxu0 0
    %790 = vmatprep.mubr.bf16.mxu0 0
    %791 = vmatmul.mubr.bf16.gmra.mrb[0].mxu0 %v756
    %v792 = vpop.f32.mrb[0].mxu0
    %v793 = vadd.f32 0.0, %v792
    %v794 = vpop.f32.mrb[0].mxu0
    %v795 = vpop.f32.mrb[0].mxu0
    %v796 = vpop.f32.mrb[0].mxu0
    %797 = vdwg.mxu0
    %v798 = vadd.f32 %v304, %v793
    %v799 = vxor.u32 %v798, 2147483648
    %v800 = vmul.f32 %v799, 1.442695
    %v801 = vpow.pop %v800
    %v802 = vadd.f32 %v801, 1.0
    %v803 = vrcp.pop %v802
    %v804 = vmul.f32 1.0, %v803
    %v805 = vtanh.pop %v798
    %v806 = vmul.f32 %v804, %v744
    %808 = vrot.lane.b32.xlu0 %v805, 64
    %v809 = vpop.permute.xlu0 %808
    %v811 = vmul.f32 %v804, %v809
    %813 = vrot.lane.b32.xlu0 %v811, 32
    %v814 = vpop.permute.xlu0 %813
    %v816 = vadd.f32 %v806, %v814
    %v817 = vtanh.pop %v816
    %819 = vrot.lane.b32.xlu0 %v817, 64
    %v820 = vpop.permute.xlu0 %819
    %v822 = vmul.f32 %v804, %v820
    %v823 = vpack.c.bf16 %v822, %v822
    %825 = vrot.lane.b32.xlu0 %v823, 32
    %v826 = vpop.permute.xlu0 %825
    %v828 = vsel %vm322, %v826, 0
    %830 = vmatprep.subr.bf16.mxu0 0
    %831 = vmatpush1.bf16.msra.mxu0 %v318
    %832 = vmatprep.subr.bf16.mxu0 0
    %833 = vmatpush1.bf16.msra.mxu0 %v319
    %834 = vmatprep.subr.bf16.mxu0 0
    %835 = vmatpush1.bf16.msra.mxu0 0
    %836 = vmatprep.subr.bf16.mxu0 0
    %837 = vmatpush1.bf16.msra.mxu0 0
    %838 = vmatprep.subr.bf16.mxu0 0
    %839 = vmatpush1.bf16.msra.mxu0 0
    %840 = vmatprep.subr.bf16.mxu0 0
    %841 = vmatpush1.bf16.msra.mxu0 0
    %842 = vmatprep.subr.bf16.mxu0 0
    %843 = vmatpush1.bf16.msra.mxu0 0
    %844 = vmatprep.subr.bf16.mxu0 0
    %845 = vmatpush1.bf16.msra.mxu0 0
    %846 = vmatprep.subr.bf16.mxu0 0
    %847 = vmatpush1.bf16.msra.mxu0 0
    %848 = vmatprep.subr.bf16.mxu0 0
    %849 = vmatpush1.bf16.msra.mxu0 0
    %850 = vmatprep.subr.bf16.mxu0 0
    %851 = vmatpush1.bf16.msra.mxu0 0
    %852 = vmatprep.subr.bf16.mxu0 0
    %853 = vmatpush1.bf16.msra.mxu0 0
    %854 = vmatprep.subr.bf16.mxu0 0
    %855 = vmatpush1.bf16.msra.mxu0 0
    %856 = vmatprep.subr.bf16.mxu0 0
    %857 = vmatpush1.bf16.msra.mxu0 0
    %858 = vmatprep.subr.bf16.mxu0 0
    %859 = vmatpush1.bf16.msra.mxu0 0
    %860 = vmatprep.subr.bf16.mxu0 0
    %861 = vmatpush1.bf16.msra.mxu0 0
    %862 = vmatprep.mubr.bf16.mxu0 0
    %863 = vmatmul.mubr.bf16.gmra.mrb[0].mxu0 %v828
    %v864 = vpop.f32.mrb[0].mxu0
    %v865 = vadd.f32 0.0, %v864
    %v866 = vpop.f32.mrb[0].mxu0
    %v867 = vpop.f32.mrb[0].mxu0
    %v868 = vpop.f32.mrb[0].mxu0
    %869 = vdwg.mxu0
    %v870 = vadd.f32 %v307, %v865
    %v871 = vxor.u32 %v870, 2147483648
    %v872 = vmul.f32 %v871, 1.442695
    %v873 = vpow.pop %v872
    %v874 = vadd.f32 %v873, 1.0
    %v875 = vrcp.pop %v874
    %v876 = vmul.f32 1.0, %v875
    %v877 = vtanh.pop %v870
    %v878 = vmul.f32 %v876, %v816
    %880 = vrot.lane.b32.xlu0 %v877, 64
    %v881 = vpop.permute.xlu0 %880
    %v883 = vmul.f32 %v876, %v881
    %885 = vrot.lane.b32.xlu0 %v883, 32
    %v886 = vpop.permute.xlu0 %885
    %v888 = vadd.f32 %v878, %v886
    %v889 = vtanh.pop %v888
    %891 = vrot.lane.b32.xlu0 %v889, 64
    %v892 = vpop.permute.xlu0 %891
    %v894 = vmul.f32 %v876, %v892
    %v895 = vld [vmem:[%s5] sm:$0xf]
    %v896 = vld [vmem:[%s5 + $0x4] sm:$0xf]
    %v897 = vld [vmem:[%s5 + $0x8] sm:$0xf]
    %v898 = vld [vmem:[%s5 + $0xc] sm:$0xf]
    %v899 = vld [vmem:[%s6] sm:$0xf]
    %v900 = vld [vmem:[%s6 + $0x4] sm:$0xf]
    %v901 = vld [vmem:[%s6 + $0x8] sm:$0xf]
    %v902 = vld [vmem:[%s6 + $0xc] sm:$0xf]
    %v903 = vld [vmem:[%s7] sm:$0x1]
    %v904 = vpack.c.bf16 %v462, %v390
    %v905 = vpack.c.bf16 %v606, %v534
    %v906 = vpack.c.bf16 %v750, %v678
    %v907 = vpack.c.bf16 %v894, %v822
    %v909 = vlaneseq
    %v910 = vshrl.u32 %v909, 7
    %v911 = vsub.s32 0, %v910
    %v912 = vrot.slane %v903, %v911
    %918 = vrot.lane.b32.xlu0 %v904, 32
    %v919 = vpop.permute.xlu0 %918
    %920 = vrot.lane.b32.xlu0 %v905, 32
    %v921 = vpop.permute.xlu0 %920
    %922 = vrot.lane.b32.xlu0 %v906, 32
    %v923 = vpop.permute.xlu0 %922
    %924 = vrot.lane.b32.xlu0 %v907, 32
    %v925 = vpop.permute.xlu0 %924
    %v930 = vunpack.c.l.b16 %v895
    %v931 = vunpack.c.l.b16 %v896
    %v932 = vunpack.c.l.b16 %v897
    %v933 = vunpack.c.l.b16 %v898
    %v934 = vpack.c.b16 %v931, %v930
    %v935 = vpack.c.b16 %v933, %v932
    %v939 = vsel %vm322, %v919, 0
    %v942 = vsel %vm322, %v921, 0
    %v945 = vsel %vm322, %v923, 0
    %v948 = vsel %vm322, %v925, 0
    %950 = vmatprep.subr.bf16.mxu0 0
    %951 = vmatpush1.bf16.msra.mxu0 %v934
    %952 = vmatprep.subr.bf16.mxu0 0
    %953 = vmatpush1.bf16.msra.mxu0 %v935
    %954 = vmatprep.subr.bf16.mxu0 0
    %955 = vmatpush1.bf16.msra.mxu0 0
    %956 = vmatprep.subr.bf16.mxu0 0
    %957 = vmatpush1.bf16.msra.mxu0 0
    %958 = vmatprep.subr.bf16.mxu0 0
    %959 = vmatpush1.bf16.msra.mxu0 0
    %960 = vmatprep.subr.bf16.mxu0 0
    %961 = vmatpush1.bf16.msra.mxu0 0
    %962 = vmatprep.subr.bf16.mxu0 0
    %963 = vmatpush1.bf16.msra.mxu0 0
    %964 = vmatprep.subr.bf16.mxu0 0
    %965 = vmatpush1.bf16.msra.mxu0 0
    %966 = vmatprep.subr.bf16.mxu0 0
    %967 = vmatpush1.bf16.msra.mxu0 0
    %968 = vmatprep.subr.bf16.mxu0 0
    %969 = vmatpush1.bf16.msra.mxu0 0
    %970 = vmatprep.subr.bf16.mxu0 0
    %971 = vmatpush1.bf16.msra.mxu0 0
    %972 = vmatprep.subr.bf16.mxu0 0
    %973 = vmatpush1.bf16.msra.mxu0 0
    %974 = vmatprep.subr.bf16.mxu0 0
    %975 = vmatpush1.bf16.msra.mxu0 0
    %976 = vmatprep.subr.bf16.mxu0 0
    %977 = vmatpush1.bf16.msra.mxu0 0
    %978 = vmatprep.subr.bf16.mxu0 0
    %979 = vmatpush1.bf16.msra.mxu0 0
    %980 = vmatprep.subr.bf16.mxu0 0
    %981 = vmatpush1.bf16.msra.mxu0 0
    %982 = vmatprep.mubr.bf16.mxu0 0
    %983 = vmatmul.mubr.bf16.gmra.mrb[0].mxu0 %v939
    %v984 = vpop.f32.mrb[0].mxu0
    %v985 = vadd.f32 %v912, %v984
    %v986 = vpop.f32.mrb[0].mxu0
    %v987 = vpop.f32.mrb[0].mxu0
    %v988 = vadd.f32 %v912, %v987
    %v989 = vpop.f32.mrb[0].mxu0
    %990 = vmatprep.mubr.bf16.mxu0 0
    %991 = vmatmul.mubr.bf16.gmra.mrb[0].mxu0 %v942
    %v992 = vpop.f32.mrb[0].mxu0
    %v993 = vadd.f32 %v912, %v992
    %v994 = vpop.f32.mrb[0].mxu0
    %v995 = vpop.f32.mrb[0].mxu0
    %v996 = vadd.f32 %v912, %v995
    %v997 = vpop.f32.mrb[0].mxu0
    %998 = vmatprep.mubr.bf16.mxu0 0
    %999 = vmatmul.mubr.bf16.gmra.mrb[0].mxu0 %v945
    %v1000 = vpop.f32.mrb[0].mxu0
    %v1001 = vadd.f32 %v912, %v1000
    %v1002 = vpop.f32.mrb[0].mxu0
    %v1003 = vpop.f32.mrb[0].mxu0
    %v1004 = vadd.f32 %v912, %v1003
    %v1005 = vpop.f32.mrb[0].mxu0
    %1006 = vmatprep.mubr.bf16.mxu0 0
    %1007 = vmatmul.mubr.bf16.gmra.mrb[0].mxu0 %v948
    %v1008 = vpop.f32.mrb[0].mxu0
    %v1009 = vadd.f32 %v912, %v1008
    %v1010 = vpop.f32.mrb[0].mxu0
    %v1011 = vpop.f32.mrb[0].mxu0
    %v1012 = vadd.f32 %v912, %v1011
    %v1013 = vpop.f32.mrb[0].mxu0
    %1014 = vdwg.mxu0
    %v1019 = vunpack.c.l.b16 %v899
    %v1020 = vunpack.c.l.b16 %v900
    %v1021 = vunpack.c.l.b16 %v901
    %v1022 = vunpack.c.l.b16 %v902
    %v1023 = vpack.c.b16 %v1020, %v1019
    %v1024 = vpack.c.b16 %v1022, %v1021
    %1027 = vmatprep.subr.bf16.mxu0 0
    %1028 = vmatpush1.bf16.msra.mxu0 %v1023
    %1029 = vmatprep.subr.bf16.mxu0 0
    %1030 = vmatpush1.bf16.msra.mxu0 %v1024
    %1031 = vmatprep.subr.bf16.mxu0 0
    %1032 = vmatpush1.bf16.msra.mxu0 0
    %1033 = vmatprep.subr.bf16.mxu0 0
    %1034 = vmatpush1.bf16.msra.mxu0 0
    %1035 = vmatprep.subr.bf16.mxu0 0
    %1036 = vmatpush1.bf16.msra.mxu0 0
    %1037 = vmatprep.subr.bf16.mxu0 0
    %1038 = vmatpush1.bf16.msra.mxu0 0
    %1039 = vmatprep.subr.bf16.mxu0 0
    %1040 = vmatpush1.bf16.msra.mxu0 0
    %1041 = vmatprep.subr.bf16.mxu0 0
    %1042 = vmatpush1.bf16.msra.mxu0 0
    %1043 = vmatprep.subr.bf16.mxu0 0
    %1044 = vmatpush1.bf16.msra.mxu0 0
    %1045 = vmatprep.subr.bf16.mxu0 0
    %1046 = vmatpush1.bf16.msra.mxu0 0
    %1047 = vmatprep.subr.bf16.mxu0 0
    %1048 = vmatpush1.bf16.msra.mxu0 0
    %1049 = vmatprep.subr.bf16.mxu0 0
    %1050 = vmatpush1.bf16.msra.mxu0 0
    %1051 = vmatprep.subr.bf16.mxu0 0
    %1052 = vmatpush1.bf16.msra.mxu0 0
    %1053 = vmatprep.subr.bf16.mxu0 0
    %1054 = vmatpush1.bf16.msra.mxu0 0
    %1055 = vmatprep.subr.bf16.mxu0 0
    %1056 = vmatpush1.bf16.msra.mxu0 0
    %1057 = vmatprep.subr.bf16.mxu0 0
    %1058 = vmatpush1.bf16.msra.mxu0 0
    %1059 = vmatprep.mubr.bf16.mxu0 0
    %1060 = vmatmul.mubr.bf16.gmra.mrb[0].mxu0 %v324
    %v1061 = vpop.f32.mrb[0].mxu0
    %v1062 = vadd.f32 0.0, %v1061
    %v1063 = vpop.f32.mrb[0].mxu0
    %v1064 = vpop.f32.mrb[0].mxu0
    %v1065 = vpop.f32.mrb[0].mxu0
    %1066 = vdwg.mxu0
    %v1067 = vadd.f32 %v985, %v1062
    %v1068 = vxor.u32 %v1067, 2147483648
    %v1069 = vmul.f32 %v1068, 1.442695
    %v1070 = vpow.pop %v1069
    %v1071 = vadd.f32 %v1070, 1.0
    %v1072 = vrcp.pop %v1071
    %v1073 = vmul.f32 1.0, %v1072
    %v1074 = vtanh.pop %v1067
    %v1075 = vmul.f32 %v1073, 0.0
    %1077 = vrot.lane.b32.xlu0 %v1074, 64
    %v1078 = vpop.permute.xlu0 %1077
    %v1080 = vmul.f32 %v1073, %v1078
    %1082 = vrot.lane.b32.xlu0 %v1080, 32
    %v1083 = vpop.permute.xlu0 %1082
    %v1085 = vadd.f32 %v1075, %v1083
    %v1086 = vtanh.pop %v1085
    %1088 = vrot.lane.b32.xlu0 %v1086, 64
    %v1089 = vpop.permute.xlu0 %1088
    %v1091 = vmul.f32 %v1073, %v1089
    %vm1092 = vcmp.eq.s32.totalorder %v73, 1
    %v1093 = vsel %vm1092, 1, 0
    %1094 = vset.pattern.permute.xlu0 0
    %1095 = vperm.xlu0 %1094, %v1093
    %v1096 = vpop.permute.xlu0 %1095
    %vm1097 = vcmp.eq.s32.totalorder %v1096, 1
    %v1098 = vsel %vm1097, %v1091, 0.0
    %v1099 = vpack.c.bf16 %v1091, %v1091
    %1101 = vrot.lane.b32.xlu0 %v1099, 32
    %v1102 = vpop.permute.xlu0 %1101
    %v1104 = vsel %vm322, %v1102, 0
    %1106 = vmatprep.subr.bf16.mxu0 0
    %1107 = vmatpush1.bf16.msra.mxu0 %v1023
    %1108 = vmatprep.subr.bf16.mxu0 0
    %1109 = vmatpush1.bf16.msra.mxu0 %v1024
    %1110 = vmatprep.subr.bf16.mxu0 0
    %1111 = vmatpush1.bf16.msra.mxu0 0
    %1112 = vmatprep.subr.bf16.mxu0 0
    %1113 = vmatpush1.bf16.msra.mxu0 0
    %1114 = vmatprep.subr.bf16.mxu0 0
    %1115 = vmatpush1.bf16.msra.mxu0 0
    %1116 = vmatprep.subr.bf16.mxu0 0
    %1117 = vmatpush1.bf16.msra.mxu0 0
    %1118 = vmatprep.subr.bf16.mxu0 0
    %1119 = vmatpush1.bf16.msra.mxu0 0
    %1120 = vmatprep.subr.bf16.mxu0 0
    %1121 = vmatpush1.bf16.msra.mxu0 0
    %1122 = vmatprep.subr.bf16.mxu0 0
    %1123 = vmatpush1.bf16.msra.mxu0 0
    %1124 = vmatprep.subr.bf16.mxu0 0
    %1125 = vmatpush1.bf16.msra.mxu0 0
    %1126 = vmatprep.subr.bf16.mxu0 0
    %1127 = vmatpush1.bf16.msra.mxu0 0
    %1128 = vmatprep.subr.bf16.mxu0 0
    %1129 = vmatpush1.bf16.msra.mxu0 0
    %1130 = vmatprep.subr.bf16.mxu0 0
    %1131 = vmatpush1.bf16.msra.mxu0 0
    %1132 = vmatprep.subr.bf16.mxu0 0
    %1133 = vmatpush1.bf16.msra.mxu0 0
    %1134 = vmatprep.subr.bf16.mxu0 0
    %1135 = vmatpush1.bf16.msra.mxu0 0
    %1136 = vmatprep.subr.bf16.mxu0 0
    %1137 = vmatpush1.bf16.msra.mxu0 0
    %1138 = vmatprep.mubr.bf16.mxu0 0
    %1139 = vmatmul.mubr.bf16.gmra.mrb[0].mxu0 %v1104
    %v1140 = vpop.f32.mrb[0].mxu0
    %v1141 = vadd.f32 0.0, %v1140
    %v1142 = vpop.f32.mrb[0].mxu0
    %v1143 = vpop.f32.mrb[0].mxu0
    %v1144 = vpop.f32.mrb[0].mxu0
    %1145 = vdwg.mxu0
    %v1146 = vadd.f32 %v988, %v1141
    %v1147 = vxor.u32 %v1146, 2147483648
    %v1148 = vmul.f32 %v1147, 1.442695
    %v1149 = vpow.pop %v1148
    %v1150 = vadd.f32 %v1149, 1.0
    %v1151 = vrcp.pop %v1150
    %v1152 = vmul.f32 1.0, %v1151
    %v1153 = vtanh.pop %v1146
    %v1154 = vmul.f32 %v1152, %v1085
    %1156 = vrot.lane.b32.xlu0 %v1153, 64
    %v1157 = vpop.permute.xlu0 %1156
    %v1159 = vmul.f32 %v1152, %v1157
    %1161 = vrot.lane.b32.xlu0 %v1159, 32
    %v1162 = vpop.permute.xlu0 %1161
    %v1164 = vadd.f32 %v1154, %v1162
    %v1165 = vtanh.pop %v1164
    %1167 = vrot.lane.b32.xlu0 %v1165, 64
    %v1168 = vpop.permute.xlu0 %1167
    %v1170 = vmul.f32 %v1152, %v1168
    %vm1171 = vcmp.eq.s32.totalorder %v73, 2
    %v1172 = vsel %vm1171, 1, 0
    %1173 = vset.pattern.permute.xlu0 0
    %1174 = vperm.xlu0 %1173, %v1172
    %v1175 = vpop.permute.xlu0 %1174
    %vm1176 = vcmp.eq.s32.totalorder %v1175, 1
    %v1177 = vsel %vm1176, %v1170, %v1098
    %v1178 = vpack.c.bf16 %v1170, %v1170
    %1180 = vrot.lane.b32.xlu0 %v1178, 32
    %v1181 = vpop.permute.xlu0 %1180
    %v1183 = vsel %vm322, %v1181, 0
    %1185 = vmatprep.subr.bf16.mxu0 0
    %1186 = vmatpush1.bf16.msra.mxu0 %v1023
    %1187 = vmatprep.subr.bf16.mxu0 0
    %1188 = vmatpush1.bf16.msra.mxu0 %v1024
    %1189 = vmatprep.subr.bf16.mxu0 0
    %1190 = vmatpush1.bf16.msra.mxu0 0
    %1191 = vmatprep.subr.bf16.mxu0 0
    %1192 = vmatpush1.bf16.msra.mxu0 0
    %1193 = vmatprep.subr.bf16.mxu0 0
    %1194 = vmatpush1.bf16.msra.mxu0 0
    %1195 = vmatprep.subr.bf16.mxu0 0
    %1196 = vmatpush1.bf16.msra.mxu0 0
    %1197 = vmatprep.subr.bf16.mxu0 0
    %1198 = vmatpush1.bf16.msra.mxu0 0
    %1199 = vmatprep.subr.bf16.mxu0 0
    %1200 = vmatpush1.bf16.msra.mxu0 0
    %1201 = vmatprep.subr.bf16.mxu0 0
    %1202 = vmatpush1.bf16.msra.mxu0 0
    %1203 = vmatprep.subr.bf16.mxu0 0
    %1204 = vmatpush1.bf16.msra.mxu0 0
    %1205 = vmatprep.subr.bf16.mxu0 0
    %1206 = vmatpush1.bf16.msra.mxu0 0
    %1207 = vmatprep.subr.bf16.mxu0 0
    %1208 = vmatpush1.bf16.msra.mxu0 0
    %1209 = vmatprep.subr.bf16.mxu0 0
    %1210 = vmatpush1.bf16.msra.mxu0 0
    %1211 = vmatprep.subr.bf16.mxu0 0
    %1212 = vmatpush1.bf16.msra.mxu0 0
    %1213 = vmatprep.subr.bf16.mxu0 0
    %1214 = vmatpush1.bf16.msra.mxu0 0
    %1215 = vmatprep.subr.bf16.mxu0 0
    %1216 = vmatpush1.bf16.msra.mxu0 0
    %1217 = vmatprep.mubr.bf16.mxu0 0
    %1218 = vmatmul.mubr.bf16.gmra.mrb[0].mxu0 %v1183
    %v1219 = vpop.f32.mrb[0].mxu0
    %v1220 = vadd.f32 0.0, %v1219
    %v1221 = vpop.f32.mrb[0].mxu0
    %v1222 = vpop.f32.mrb[0].mxu0
    %v1223 = vpop.f32.mrb[0].mxu0
    %1224 = vdwg.mxu0
    %v1225 = vadd.f32 %v993, %v1220
    %v1226 = vxor.u32 %v1225, 2147483648
    %v1227 = vmul.f32 %v1226, 1.442695
    %v1228 = vpow.pop %v1227
    %v1229 = vadd.f32 %v1228, 1.0
    %v1230 = vrcp.pop %v1229
    %v1231 = vmul.f32 1.0, %v1230
    %v1232 = vtanh.pop %v1225
    %v1233 = vmul.f32 %v1231, %v1164
    %1235 = vrot.lane.b32.xlu0 %v1232, 64
    %v1236 = vpop.permute.xlu0 %1235
    %v1238 = vmul.f32 %v1231, %v1236
    %1240 = vrot.lane.b32.xlu0 %v1238, 32
    %v1241 = vpop.permute.xlu0 %1240
    %v1243 = vadd.f32 %v1233, %v1241
    %v1244 = vtanh.pop %v1243
    %1246 = vrot.lane.b32.xlu0 %v1244, 64
    %v1247 = vpop.permute.xlu0 %1246
    %v1249 = vmul.f32 %v1231, %v1247
    %vm1250 = vcmp.eq.s32.totalorder %v73, 3
    %v1251 = vsel %vm1250, 1, 0
    %1252 = vset.pattern.permute.xlu0 0
    %1253 = vperm.xlu0 %1252, %v1251
    %v1254 = vpop.permute.xlu0 %1253
    %vm1255 = vcmp.eq.s32.totalorder %v1254, 1
    %v1256 = vsel %vm1255, %v1249, %v1177
    %v1257 = vpack.c.bf16 %v1249, %v1249
    %1259 = vrot.lane.b32.xlu0 %v1257, 32
    %v1260 = vpop.permute.xlu0 %1259
    %v1262 = vsel %vm322, %v1260, 0
    %1264 = vmatprep.subr.bf16.mxu0 0
    %1265 = vmatpush1.bf16.msra.mxu0 %v1023
    %1266 = vmatprep.subr.bf16.mxu0 0
    %1267 = vmatpush1.bf16.msra.mxu0 %v1024
    %1268 = vmatprep.subr.bf16.mxu0 0
    %1269 = vmatpush1.bf16.msra.mxu0 0
    %1270 = vmatprep.subr.bf16.mxu0 0
    %1271 = vmatpush1.bf16.msra.mxu0 0
    %1272 = vmatprep.subr.bf16.mxu0 0
    %1273 = vmatpush1.bf16.msra.mxu0 0
    %1274 = vmatprep.subr.bf16.mxu0 0
    %1275 = vmatpush1.bf16.msra.mxu0 0
    %1276 = vmatprep.subr.bf16.mxu0 0
    %1277 = vmatpush1.bf16.msra.mxu0 0
    %1278 = vmatprep.subr.bf16.mxu0 0
    %1279 = vmatpush1.bf16.msra.mxu0 0
    %1280 = vmatprep.subr.bf16.mxu0 0
    %1281 = vmatpush1.bf16.msra.mxu0 0
    %1282 = vmatprep.subr.bf16.mxu0 0
    %1283 = vmatpush1.bf16.msra.mxu0 0
    %1284 = vmatprep.subr.bf16.mxu0 0
    %1285 = vmatpush1.bf16.msra.mxu0 0
    %1286 = vmatprep.subr.bf16.mxu0 0
    %1287 = vmatpush1.bf16.msra.mxu0 0
    %1288 = vmatprep.subr.bf16.mxu0 0
    %1289 = vmatpush1.bf16.msra.mxu0 0
    %1290 = vmatprep.subr.bf16.mxu0 0
    %1291 = vmatpush1.bf16.msra.mxu0 0
    %1292 = vmatprep.subr.bf16.mxu0 0
    %1293 = vmatpush1.bf16.msra.mxu0 0
    %1294 = vmatprep.subr.bf16.mxu0 0
    %1295 = vmatpush1.bf16.msra.mxu0 0
    %1296 = vmatprep.mubr.bf16.mxu0 0
    %1297 = vmatmul.mubr.bf16.gmra.mrb[0].mxu0 %v1262
    %v1298 = vpop.f32.mrb[0].mxu0
    %v1299 = vadd.f32 0.0, %v1298
    %v1300 = vpop.f32.mrb[0].mxu0
    %v1301 = vpop.f32.mrb[0].mxu0
    %v1302 = vpop.f32.mrb[0].mxu0
    %1303 = vdwg.mxu0
    %v1304 = vadd.f32 %v996, %v1299
    %v1305 = vxor.u32 %v1304, 2147483648
    %v1306 = vmul.f32 %v1305, 1.442695
    %v1307 = vpow.pop %v1306
    %v1308 = vadd.f32 %v1307, 1.0
    %v1309 = vrcp.pop %v1308
    %v1310 = vmul.f32 1.0, %v1309
    %v1311 = vtanh.pop %v1304
    %v1312 = vmul.f32 %v1310, %v1243
    %1314 = vrot.lane.b32.xlu0 %v1311, 64
    %v1315 = vpop.permute.xlu0 %1314
    %v1317 = vmul.f32 %v1310, %v1315
    %1319 = vrot.lane.b32.xlu0 %v1317, 32
    %v1320 = vpop.permute.xlu0 %1319
    %v1322 = vadd.f32 %v1312, %v1320
    %v1323 = vtanh.pop %v1322
    %1325 = vrot.lane.b32.xlu0 %v1323, 64
    %v1326 = vpop.permute.xlu0 %1325
    %v1328 = vmul.f32 %v1310, %v1326
    %vm1329 = vcmp.eq.s32.totalorder %v73, 4
    %v1330 = vsel %vm1329, 1, 0
    %1331 = vset.pattern.permute.xlu0 0
    %1332 = vperm.xlu0 %1331, %v1330
    %v1333 = vpop.permute.xlu0 %1332
    %vm1334 = vcmp.eq.s32.totalorder %v1333, 1
    %v1335 = vsel %vm1334, %v1328, %v1256
    %v1336 = vpack.c.bf16 %v1328, %v1328
    %1338 = vrot.lane.b32.xlu0 %v1336, 32
    %v1339 = vpop.permute.xlu0 %1338
    %v1341 = vsel %vm322, %v1339, 0
    %1343 = vmatprep.subr.bf16.mxu0 0
    %1344 = vmatpush1.bf16.msra.mxu0 %v1023
    %1345 = vmatprep.subr.bf16.mxu0 0
    %1346 = vmatpush1.bf16.msra.mxu0 %v1024
    %1347 = vmatprep.subr.bf16.mxu0 0
    %1348 = vmatpush1.bf16.msra.mxu0 0
    %1349 = vmatprep.subr.bf16.mxu0 0
    %1350 = vmatpush1.bf16.msra.mxu0 0
    %1351 = vmatprep.subr.bf16.mxu0 0
    %1352 = vmatpush1.bf16.msra.mxu0 0
    %1353 = vmatprep.subr.bf16.mxu0 0
    %1354 = vmatpush1.bf16.msra.mxu0 0
    %1355 = vmatprep.subr.bf16.mxu0 0
    %1356 = vmatpush1.bf16.msra.mxu0 0
    %1357 = vmatprep.subr.bf16.mxu0 0
    %1358 = vmatpush1.bf16.msra.mxu0 0
    %1359 = vmatprep.subr.bf16.mxu0 0
    %1360 = vmatpush1.bf16.msra.mxu0 0
    %1361 = vmatprep.subr.bf16.mxu0 0
    %1362 = vmatpush1.bf16.msra.mxu0 0
    %1363 = vmatprep.subr.bf16.mxu0 0
    %1364 = vmatpush1.bf16.msra.mxu0 0
    %1365 = vmatprep.subr.bf16.mxu0 0
    %1366 = vmatpush1.bf16.msra.mxu0 0
    %1367 = vmatprep.subr.bf16.mxu0 0
    %1368 = vmatpush1.bf16.msra.mxu0 0
    %1369 = vmatprep.subr.bf16.mxu0 0
    %1370 = vmatpush1.bf16.msra.mxu0 0
    %1371 = vmatprep.subr.bf16.mxu0 0
    %1372 = vmatpush1.bf16.msra.mxu0 0
    %1373 = vmatprep.subr.bf16.mxu0 0
    %1374 = vmatpush1.bf16.msra.mxu0 0
    %1375 = vmatprep.mubr.bf16.mxu0 0
    %1376 = vmatmul.mubr.bf16.gmra.mrb[0].mxu0 %v1341
    %v1377 = vpop.f32.mrb[0].mxu0
    %v1378 = vadd.f32 0.0, %v1377
    %v1379 = vpop.f32.mrb[0].mxu0
    %v1380 = vpop.f32.mrb[0].mxu0
    %v1381 = vpop.f32.mrb[0].mxu0
    %1382 = vdwg.mxu0
    %v1383 = vadd.f32 %v1001, %v1378
    %v1384 = vxor.u32 %v1383, 2147483648
    %v1385 = vmul.f32 %v1384, 1.442695
    %v1386 = vpow.pop %v1385
    %v1387 = vadd.f32 %v1386, 1.0
    %v1388 = vrcp.pop %v1387
    %v1389 = vmul.f32 1.0, %v1388
    %v1390 = vtanh.pop %v1383
    %v1391 = vmul.f32 %v1389, %v1322
    %1393 = vrot.lane.b32.xlu0 %v1390, 64
    %v1394 = vpop.permute.xlu0 %1393
    %v1396 = vmul.f32 %v1389, %v1394
    %1398 = vrot.lane.b32.xlu0 %v1396, 32
    %v1399 = vpop.permute.xlu0 %1398
    %v1401 = vadd.f32 %v1391, %v1399
    %v1402 = vtanh.pop %v1401
    %1404 = vrot.lane.b32.xlu0 %v1402, 64
    %v1405 = vpop.permute.xlu0 %1404
    %v1407 = vmul.f32 %v1389, %v1405
    %vm1408 = vcmp.eq.s32.totalorder %v73, 5
    %v1409 = vsel %vm1408, 1, 0
    %1410 = vset.pattern.permute.xlu0 0
    %1411 = vperm.xlu0 %1410, %v1409
    %v1412 = vpop.permute.xlu0 %1411
    %vm1413 = vcmp.eq.s32.totalorder %v1412, 1
    %v1414 = vsel %vm1413, %v1407, %v1335
    %v1415 = vpack.c.bf16 %v1407, %v1407
    %1417 = vrot.lane.b32.xlu0 %v1415, 32
    %v1418 = vpop.permute.xlu0 %1417
    %v1420 = vsel %vm322, %v1418, 0
    %1422 = vmatprep.subr.bf16.mxu0 0
    %1423 = vmatpush1.bf16.msra.mxu0 %v1023
    %1424 = vmatprep.subr.bf16.mxu0 0
    %1425 = vmatpush1.bf16.msra.mxu0 %v1024
    %1426 = vmatprep.subr.bf16.mxu0 0
    %1427 = vmatpush1.bf16.msra.mxu0 0
    %1428 = vmatprep.subr.bf16.mxu0 0
    %1429 = vmatpush1.bf16.msra.mxu0 0
    %1430 = vmatprep.subr.bf16.mxu0 0
    %1431 = vmatpush1.bf16.msra.mxu0 0
    %1432 = vmatprep.subr.bf16.mxu0 0
    %1433 = vmatpush1.bf16.msra.mxu0 0
    %1434 = vmatprep.subr.bf16.mxu0 0
    %1435 = vmatpush1.bf16.msra.mxu0 0
    %1436 = vmatprep.subr.bf16.mxu0 0
    %1437 = vmatpush1.bf16.msra.mxu0 0
    %1438 = vmatprep.subr.bf16.mxu0 0
    %1439 = vmatpush1.bf16.msra.mxu0 0
    %1440 = vmatprep.subr.bf16.mxu0 0
    %1441 = vmatpush1.bf16.msra.mxu0 0
    %1442 = vmatprep.subr.bf16.mxu0 0
    %1443 = vmatpush1.bf16.msra.mxu0 0
    %1444 = vmatprep.subr.bf16.mxu0 0
    %1445 = vmatpush1.bf16.msra.mxu0 0
    %1446 = vmatprep.subr.bf16.mxu0 0
    %1447 = vmatpush1.bf16.msra.mxu0 0
    %1448 = vmatprep.subr.bf16.mxu0 0
    %1449 = vmatpush1.bf16.msra.mxu0 0
    %1450 = vmatprep.subr.bf16.mxu0 0
    %1451 = vmatpush1.bf16.msra.mxu0 0
    %1452 = vmatprep.subr.bf16.mxu0 0
    %1453 = vmatpush1.bf16.msra.mxu0 0
    %1454 = vmatprep.mubr.bf16.mxu0 0
    %1455 = vmatmul.mubr.bf16.gmra.mrb[0].mxu0 %v1420
    %v1456 = vpop.f32.mrb[0].mxu0
    %v1457 = vadd.f32 0.0, %v1456
    %v1458 = vpop.f32.mrb[0].mxu0
    %v1459 = vpop.f32.mrb[0].mxu0
    %v1460 = vpop.f32.mrb[0].mxu0
    %1461 = vdwg.mxu0
    %v1462 = vadd.f32 %v1004, %v1457
    %v1463 = vxor.u32 %v1462, 2147483648
    %v1464 = vmul.f32 %v1463, 1.442695
    %v1465 = vpow.pop %v1464
    %v1466 = vadd.f32 %v1465, 1.0
    %v1467 = vrcp.pop %v1466
    %v1468 = vmul.f32 1.0, %v1467
    %v1469 = vtanh.pop %v1462
    %v1470 = vmul.f32 %v1468, %v1401
    %1472 = vrot.lane.b32.xlu0 %v1469, 64
    %v1473 = vpop.permute.xlu0 %1472
    %v1475 = vmul.f32 %v1468, %v1473
    %1477 = vrot.lane.b32.xlu0 %v1475, 32
    %v1478 = vpop.permute.xlu0 %1477
    %v1480 = vadd.f32 %v1470, %v1478
    %v1481 = vtanh.pop %v1480
    %1483 = vrot.lane.b32.xlu0 %v1481, 64
    %v1484 = vpop.permute.xlu0 %1483
    %v1486 = vmul.f32 %v1468, %v1484
    %vm1487 = vcmp.eq.s32.totalorder %v73, 6
    %v1488 = vsel %vm1487, 1, 0
    %1489 = vset.pattern.permute.xlu0 0
    %1490 = vperm.xlu0 %1489, %v1488
    %v1491 = vpop.permute.xlu0 %1490
    %vm1492 = vcmp.eq.s32.totalorder %v1491, 1
    %v1493 = vsel %vm1492, %v1486, %v1414
    %v1494 = vpack.c.bf16 %v1486, %v1486
    %1496 = vrot.lane.b32.xlu0 %v1494, 32
    %v1497 = vpop.permute.xlu0 %1496
    %v1499 = vsel %vm322, %v1497, 0
    %1501 = vmatprep.subr.bf16.mxu0 0
    %1502 = vmatpush1.bf16.msra.mxu0 %v1023
    %1503 = vmatprep.subr.bf16.mxu0 0
    %1504 = vmatpush1.bf16.msra.mxu0 %v1024
    %1505 = vmatprep.subr.bf16.mxu0 0
    %1506 = vmatpush1.bf16.msra.mxu0 0
    %1507 = vmatprep.subr.bf16.mxu0 0
    %1508 = vmatpush1.bf16.msra.mxu0 0
    %1509 = vmatprep.subr.bf16.mxu0 0
    %1510 = vmatpush1.bf16.msra.mxu0 0
    %1511 = vmatprep.subr.bf16.mxu0 0
    %1512 = vmatpush1.bf16.msra.mxu0 0
    %1513 = vmatprep.subr.bf16.mxu0 0
    %1514 = vmatpush1.bf16.msra.mxu0 0
    %1515 = vmatprep.subr.bf16.mxu0 0
    %1516 = vmatpush1.bf16.msra.mxu0 0
    %1517 = vmatprep.subr.bf16.mxu0 0
    %1518 = vmatpush1.bf16.msra.mxu0 0
    %1519 = vmatprep.subr.bf16.mxu0 0
    %1520 = vmatpush1.bf16.msra.mxu0 0
    %1521 = vmatprep.subr.bf16.mxu0 0
    %1522 = vmatpush1.bf16.msra.mxu0 0
    %1523 = vmatprep.subr.bf16.mxu0 0
    %1524 = vmatpush1.bf16.msra.mxu0 0
    %1525 = vmatprep.subr.bf16.mxu0 0
    %1526 = vmatpush1.bf16.msra.mxu0 0
    %1527 = vmatprep.subr.bf16.mxu0 0
    %1528 = vmatpush1.bf16.msra.mxu0 0
    %1529 = vmatprep.subr.bf16.mxu0 0
    %1530 = vmatpush1.bf16.msra.mxu0 0
    %1531 = vmatprep.subr.bf16.mxu0 0
    %1532 = vmatpush1.bf16.msra.mxu0 0
    %1533 = vmatprep.mubr.bf16.mxu0 0
    %1534 = vmatmul.mubr.bf16.gmra.mrb[0].mxu0 %v1499
    %v1535 = vpop.f32.mrb[0].mxu0
    %v1536 = vadd.f32 0.0, %v1535
    %v1537 = vpop.f32.mrb[0].mxu0
    %v1538 = vpop.f32.mrb[0].mxu0
    %v1539 = vpop.f32.mrb[0].mxu0
    %1540 = vdwg.mxu0
    %v1541 = vadd.f32 %v1009, %v1536
    %v1542 = vxor.u32 %v1541, 2147483648
    %v1543 = vmul.f32 %v1542, 1.442695
    %v1544 = vpow.pop %v1543
    %v1545 = vadd.f32 %v1544, 1.0
    %v1546 = vrcp.pop %v1545
    %v1547 = vmul.f32 1.0, %v1546
    %v1548 = vtanh.pop %v1541
    %v1549 = vmul.f32 %v1547, %v1480
    %1551 = vrot.lane.b32.xlu0 %v1548, 64
    %v1552 = vpop.permute.xlu0 %1551
    %v1554 = vmul.f32 %v1547, %v1552
    %1556 = vrot.lane.b32.xlu0 %v1554, 32
    %v1557 = vpop.permute.xlu0 %1556
    %v1559 = vadd.f32 %v1549, %v1557
    %v1560 = vtanh.pop %v1559
    %1562 = vrot.lane.b32.xlu0 %v1560, 64
    %v1563 = vpop.permute.xlu0 %1562
    %v1565 = vmul.f32 %v1547, %v1563
    %vm1566 = vcmp.eq.s32.totalorder %v73, 7
    %v1567 = vsel %vm1566, 1, 0
    %1568 = vset.pattern.permute.xlu0 0
    %1569 = vperm.xlu0 %1568, %v1567
    %v1570 = vpop.permute.xlu0 %1569
    %vm1571 = vcmp.eq.s32.totalorder %v1570, 1
    %v1572 = vsel %vm1571, %v1565, %v1493
    %v1573 = vpack.c.bf16 %v1565, %v1565
    %1575 = vrot.lane.b32.xlu0 %v1573, 32
    %v1576 = vpop.permute.xlu0 %1575
    %v1578 = vsel %vm322, %v1576, 0
    %1580 = vmatprep.subr.bf16.mxu0 0
    %1581 = vmatpush1.bf16.msra.mxu0 %v1023
    %1582 = vmatprep.subr.bf16.mxu0 0
    %1583 = vmatpush1.bf16.msra.mxu0 %v1024
    %1584 = vmatprep.subr.bf16.mxu0 0
    %1585 = vmatpush1.bf16.msra.mxu0 0
    %1586 = vmatprep.subr.bf16.mxu0 0
    %1587 = vmatpush1.bf16.msra.mxu0 0
    %1588 = vmatprep.subr.bf16.mxu0 0
    %1589 = vmatpush1.bf16.msra.mxu0 0
    %1590 = vmatprep.subr.bf16.mxu0 0
    %1591 = vmatpush1.bf16.msra.mxu0 0
    %1592 = vmatprep.subr.bf16.mxu0 0
    %1593 = vmatpush1.bf16.msra.mxu0 0
    %1594 = vmatprep.subr.bf16.mxu0 0
    %1595 = vmatpush1.bf16.msra.mxu0 0
    %1596 = vmatprep.subr.bf16.mxu0 0
    %1597 = vmatpush1.bf16.msra.mxu0 0
    %1598 = vmatprep.subr.bf16.mxu0 0
    %1599 = vmatpush1.bf16.msra.mxu0 0
    %1600 = vmatprep.subr.bf16.mxu0 0
    %1601 = vmatpush1.bf16.msra.mxu0 0
    %1602 = vmatprep.subr.bf16.mxu0 0
    %1603 = vmatpush1.bf16.msra.mxu0 0
    %1604 = vmatprep.subr.bf16.mxu0 0
    %1605 = vmatpush1.bf16.msra.mxu0 0
    %1606 = vmatprep.subr.bf16.mxu0 0
    %1607 = vmatpush1.bf16.msra.mxu0 0
    %1608 = vmatprep.subr.bf16.mxu0 0
    %1609 = vmatpush1.bf16.msra.mxu0 0
    %1610 = vmatprep.subr.bf16.mxu0 0
    %1611 = vmatpush1.bf16.msra.mxu0 0
    %1612 = vmatprep.mubr.bf16.mxu0 0
    %1613 = vmatmul.mubr.bf16.gmra.mrb[0].mxu0 %v1578
    %v1614 = vpop.f32.mrb[0].mxu0
    %v1615 = vadd.f32 0.0, %v1614
    %v1616 = vpop.f32.mrb[0].mxu0
    %v1617 = vpop.f32.mrb[0].mxu0
    %v1618 = vpop.f32.mrb[0].mxu0
    %1619 = vdwg.mxu0
    %v1620 = vadd.f32 %v1012, %v1615
    %v1621 = vxor.u32 %v1620, 2147483648
    %v1622 = vmul.f32 %v1621, 1.442695
    %v1623 = vpow.pop %v1622
    %v1624 = vadd.f32 %v1623, 1.0
    %v1625 = vrcp.pop %v1624
    %v1626 = vmul.f32 1.0, %v1625
    %v1627 = vtanh.pop %v1620
    %v1628 = vmul.f32 %v1626, %v1559
    %1630 = vrot.lane.b32.xlu0 %v1627, 64
    %v1631 = vpop.permute.xlu0 %1630
    %v1633 = vmul.f32 %v1626, %v1631
    %1635 = vrot.lane.b32.xlu0 %v1633, 32
    %v1636 = vpop.permute.xlu0 %1635
    %v1638 = vadd.f32 %v1628, %v1636
    %v1639 = vtanh.pop %v1638
    %1641 = vrot.lane.b32.xlu0 %v1639, 64
    %v1642 = vpop.permute.xlu0 %1641
    %v1644 = vmul.f32 %v1626, %v1642
    %vm1645 = vcmp.eq.s32.totalorder %v73, 8
    %v1646 = vsel %vm1645, 1, 0
    %1647 = vset.pattern.permute.xlu0 0
    %1648 = vperm.xlu0 %1647, %v1646
    %v1649 = vpop.permute.xlu0 %1648
    %vm1650 = vcmp.eq.s32.totalorder %v1649, 1
    %v1651 = vsel %vm1650, %v1644, %v1572
    %v1652 = vpack.c.bf16 %v1651, %v1651
    %v1653 = vld [vmem:[%s8] sm:$0xf]
    %v1654 = vld [vmem:[%s8 + $0x4] sm:$0xf]
    %v1655 = vld [vmem:[%s8 + $0x8] sm:$0xf]
    %v1656 = vld [vmem:[%s8 + $0xc] sm:$0xf]
    %v1657 = vld [vmem:[%s9] sm:$0x1]
    %v1659 = vlaneseq
    %v1660 = vshrl.u32 %v1659, 7
    %v1661 = vsub.s32 0, %v1660
    %v1662 = vrot.slane %v1657, %v1661
    %1665 = vrot.lane.b32.xlu0 %v1652, 32
    %v1666 = vpop.permute.xlu0 %1665
    %v1671 = vunpack.c.l.b16 %v1653
    %v1672 = vunpack.c.l.b16 %v1654
    %v1673 = vunpack.c.l.b16 %v1655
    %v1674 = vunpack.c.l.b16 %v1656
    %v1675 = vpack.c.b16 %v1672, %v1671
    %v1676 = vpack.c.b16 %v1674, %v1673
    %v1680 = vsel %vm322, %v1666, 0
    %1682 = vmatprep.subr.bf16.mxu0 0
    %1683 = vmatpush1.bf16.msra.mxu0 %v1675
    %1684 = vmatprep.subr.bf16.mxu0 0
    %1685 = vmatpush1.bf16.msra.mxu0 %v1676
    %1686 = vmatprep.subr.bf16.mxu0 0
    %1687 = vmatpush1.bf16.msra.mxu0 0
    %1688 = vmatprep.subr.bf16.mxu0 0
    %1689 = vmatpush1.bf16.msra.mxu0 0
    %1690 = vmatprep.subr.bf16.mxu0 0
    %1691 = vmatpush1.bf16.msra.mxu0 0
    %1692 = vmatprep.subr.bf16.mxu0 0
    %1693 = vmatpush1.bf16.msra.mxu0 0
    %1694 = vmatprep.subr.bf16.mxu0 0
    %1695 = vmatpush1.bf16.msra.mxu0 0
    %1696 = vmatprep.subr.bf16.mxu0 0
    %1697 = vmatpush1.bf16.msra.mxu0 0
    %1698 = vmatprep.subr.bf16.mxu0 0
    %1699 = vmatpush1.bf16.msra.mxu0 0
    %1700 = vmatprep.subr.bf16.mxu0 0
    %1701 = vmatpush1.bf16.msra.mxu0 0
    %1702 = vmatprep.subr.bf16.mxu0 0
    %1703 = vmatpush1.bf16.msra.mxu0 0
    %1704 = vmatprep.subr.bf16.mxu0 0
    %1705 = vmatpush1.bf16.msra.mxu0 0
    %1706 = vmatprep.subr.bf16.mxu0 0
    %1707 = vmatpush1.bf16.msra.mxu0 0
    %1708 = vmatprep.subr.bf16.mxu0 0
    %1709 = vmatpush1.bf16.msra.mxu0 0
    %1710 = vmatprep.subr.bf16.mxu0 0
    %1711 = vmatpush1.bf16.msra.mxu0 0
    %1712 = vmatprep.subr.bf16.mxu0 0
    %1713 = vmatpush1.bf16.msra.mxu0 0
    %1714 = vmatprep.mubr.bf16.mxu0 0
    %1715 = vmatmul.mubr.bf16.gmra.mrb[0].mxu0 %v1680
    %v1716 = vpop.f32.mrb[0].mxu0
    %v1717 = vadd.f32 %v1662, %v1716
    %v1718 = vpop.f32.mrb[0].mxu0
    %v1719 = vpop.f32.mrb[0].mxu0
    %v1720 = vpop.f32.mrb[0].mxu0
    %1721 = vdwg.mxu0
    %vm1722 = vcmask 64512
    %1723 = vst.msk [vmem:[#allocation7] sm:$0xff] %vm1722, %v1717
    // Predicated region
    $region50: #{tpu_custom_call.1} parent=1 // pred_check
      _
    $region51: #{tpu_custom_call.1} parent=1 // pred_check_branch
      %1725 = sbr.rel (0) target = $region53
    $region52: #{tpu_custom_call.1} parent=1 // pred_region
      %s1727 = ssub.s32 128, 128
      %1728 = vsyncadd [#allocation4], %s1727
      %s1730 = sshll.u32 [#allocation7], 4
      %s1731 = int_to_ptr.vmem [resolvable:$true] %s1730
      %1733 = dma.vmem_to_hbm [thread:$0]  %s1731, 128, %s10, [#allocation4]
    $region53: #{tpu_custom_call.1} parent=1 // pred_fallthru
      _
    // Predicated region
    $region54: #{tpu_custom_call.1} parent=1 // pred_check
      _
    $region55: #{tpu_custom_call.1} parent=1 // pred_check_branch
      %1735 = sbr.rel (0) target = $region57
    $region56: #{tpu_custom_call.1} parent=1 // pred_region
      %1736 = dma.done [#allocation4], 128
    $region57: #{tpu_custom_call.1} parent=1 // pred_fallthru
      _
    %1737 = vsyncpa [#allocation3], 1
    %1738 = vsyncpa [#allocation6], 1
    %1739 = vsyncpa [#allocation4], 1

</llo_original>
